<compile_context>
chip_gen: v7x
topology: tpu7x:2x2x1
jax: 0.10.0
libtpu: 0.0.40
codegen_flags: <defaults>
</compile_context>

<pallas_src>
import math

import jax
import jax.numpy as jnp
from jax.experimental import pallas as pl
from jax.experimental.pallas import tpu as pltpu


def _round_up(x, m):
    return (x + m - 1) // m * m


# --------------------------- parameter creation ---------------------------- #

def init_fc_block(key, in_dim, out_dim):
    """Deterministic init mimicking nn.Linear defaults (U(-1/sqrt(in), 1/sqrt(in)))."""
    kw, kb = jax.random.split(key)
    bound = 1.0 / math.sqrt(in_dim)
    w = jax.random.uniform(kw, (in_dim, out_dim), jnp.float32, -bound, bound)
    b = jax.random.uniform(kb, (out_dim,), jnp.float32, -bound, bound)
    gamma = jnp.ones((out_dim,), jnp.float32)    # LayerNorm weight
    beta = jnp.zeros((out_dim,), jnp.float32)    # LayerNorm bias
    return dict(w=w, b=b, gamma=gamma, beta=beta)


def init_ofe_params(key, observation_z_length, action_length, z_dimension,
                    hidden_dimension, phi_o_hidden_layers, phi_ao_hidden_layers):
    H = hidden_dimension
    phi_o_dims = [(observation_z_length, H), (observation_z_length + H, H)]
    phi_o_dims += [(2 * H, H)] * (phi_o_hidden_layers - 2)

    phi_ao_dims = [(action_length + H, H), (action_length + 2 * H, H)]
    phi_ao_dims += [(2 * H, H)] * (phi_ao_hidden_layers - 1)
    phi_ao_dims += [(2 * H, z_dimension)]

    keys = jax.random.split(key, len(phi_o_dims) + len(phi_ao_dims))
    phi_o = [init_fc_block(k, i, o)
             for k, (i, o) in zip(keys[:len(phi_o_dims)], phi_o_dims)]
    phi_ao = [init_fc_block(k, i, o)
              for k, (i, o) in zip(keys[len(phi_o_dims):], phi_ao_dims)]
    return phi_o, phi_ao


# ---------------------- one-time parameter packing -------------------------- #

def _part_widths(in_dims, obs_len, act_len, H, n_phi_o):
    """Static widths of the virtually-concatenated input parts for each layer."""
    parts = []
    for idx, in_d in enumerate(in_dims):
        if idx == 0:
            w = (obs_len,)
        elif idx == 1:
            w = (obs_len, H)
        elif idx < n_phi_o:
            w = (H, H)
        elif idx == n_phi_o:
            w = (act_len, H)
        elif idx == n_phi_o + 1:
            w = (act_len, H, H)
        else:
            w = (H, H)
        assert sum(w) == in_d, (idx, w, in_d)
        parts.append(w)
    return parts


def pack_ofe_params(phi_o, phi_ao):
    """Pack all layer params into two contiguous f32 buffers (done once).

    Each layer's weight is split by input part; each part's row block is padded
    to a multiple of 8 rows so every in-kernel slice starts sublane-aligned.
    """
    layers = list(phi_o) + list(phi_ao)
    in_dims = [int(p["w"].shape[0]) for p in layers]
    out_dims = [int(p["w"].shape[1]) for p in layers]
    d_pad = max(out_dims)

    n_phi_o = len(phi_o)
    obs_len = in_dims[0]
    H = out_dims[0]
    act_len = in_dims[n_phi_o] - H
    parts_per_layer = _part_widths(in_dims, obs_len, act_len, H, n_phi_o)

    w_blocks, part_offs, off = [], [], 0
    for p, widths, out_d in zip(layers, parts_per_layer, out_dims):
        offs, row0 = [], 0
        for d in widths:
            rows = _round_up(d, 8)
            blk = jnp.pad(p["w"][row0:row0 + d],
                          ((0, rows - d), (0, d_pad - out_d)))
            w_blocks.append(blk)
            offs.append(off)
            off += rows
            row0 += d
        part_offs.append(tuple(offs))
    w_all = jnp.concatenate(w_blocks, axis=0)                # (R, d_pad), R % 8 == 0

    # bias / gamma / beta: rows 3l, 3l+1, 3l+2 of one 2-D buffer.
    bgb_rows = []
    for p, out_d in zip(layers, out_dims):
        for name in ("b", "gamma", "beta"):
            bgb_rows.append(jnp.pad(p[name], (0, d_pad - out_d)))
    bgb = jnp.stack(bgb_rows, axis=0)                        # (3*L, d_pad)

    return dict(
        w_all=w_all, bgb=bgb,
        part_offs=tuple(part_offs), in_dims=tuple(in_dims), out_dims=tuple(out_dims),
        n_phi_o=n_phi_o, n_phi_ao=len(phi_ao), d_pad=d_pad,
    )


# ------------------------------ fused kernel -------------------------------- #

def _build_ofe_kernel(part_offs, out_dims, n_phi_o, n_phi_ao, mxu_dtype):
    """Build the fused kernel (layer structure is static, captured by closure)."""

    def fc_block(w_ref, bgb_ref, parts, layer):
        """y = LayerNorm(LeakyReLU(concat(parts) @ W + b)) * gamma + beta,
        with the concat realised as a split matmul over aligned ref slices."""
        out_d = out_dims[layer]
        y = None
        for p, off in zip(parts, part_offs[layer]):
            d = p.shape[-1]
            w_part = w_ref[off:off + d, 0:out_d].astype(mxu_dtype)
            contrib = jnp.dot(p.astype(mxu_dtype), w_part,
                              preferred_element_type=jnp.float32)
            y = contrib if y is None else y + contrib
        y = y + bgb_ref[3 * layer:3 * layer + 1, 0:out_d]       # bias
        # LeakyReLU, default negative_slope = 0.01.
        y = jnp.where(y > 0, y, 0.01 * y)
        # LayerNorm over last dim, eps = 1e-5, biased variance (f32 math).
        mean = jnp.mean(y, axis=-1, keepdims=True)
        cent = y - mean
        var = jnp.mean(cent * cent, axis=-1, keepdims=True)
        y = cent * jax.lax.rsqrt(var + 1e-5)
        return (y * bgb_ref[3 * layer + 1:3 * layer + 2, 0:out_d]   # gamma
                + bgb_ref[3 * layer + 2:3 * layer + 3, 0:out_d])    # beta

    def kernel(obs_ref, act_ref, w_ref, bgb_ref, out_ref):
        obs = obs_ref[...]
        act = act_ref[...]

        layer = 0
        # phi_o stack: "combined" is a list of parts (virtual concat).
        o_begin, combined, out = [obs], [obs], None
        for _ in range(n_phi_o):
            out = fc_block(w_ref, bgb_ref, combined, layer)
            layer += 1
            combined = o_begin + [out]
            o_begin = [out]

        # phi_ao stack.
        oa_begin = [act, out]
        combined = [act, out]
        for _ in range(n_phi_ao):
            out = fc_block(w_ref, bgb_ref, combined, layer)
            layer += 1
            combined = oa_begin + [out]
            oa_begin = [out]

        out_ref[...] = out.astype(out_ref.dtype)

    return kernel


# ------------------------------ forward pass -------------------------------- #

def ofe_forward(packed, observation_z, action, *, block_batch=None,
                mxu_dtype=jnp.float32):
    """Fused OFEModel forward. Set mxu_dtype=jnp.bfloat16 on v6e/v7x to halve
    matmul-input bytes / double MXU rate (elementwise + LayerNorm stay f32)."""
    B, obs_len = observation_z.shape
    act_len = action.shape[1]
    z_dim = packed["out_dims"][-1]

    if block_batch is None:
        # Small batch: one block. Large batch: 256-row tiles (multiple of 8) so
        # the pipeline double-buffers and "parallel" shards over v7x's 2 TCs.
        block_batch = B if B <= 256 else 256
    TB = block_batch
    grid = (pl.cdiv(B, TB),)

    kernel = _build_ofe_kernel(packed["part_offs"], packed["out_dims"],
                               packed["n_phi_o"], packed["n_phi_ao"], mxu_dtype)

    flops = sum(2 * B * i * o for i, o in zip(packed["in_dims"], packed["out_dims"]))
    flops += sum(8 * B * o for o in packed["out_dims"])      # LeakyReLU + LN elementwise
    transcendentals = B * len(packed["out_dims"])            # one rsqrt per row per layer
    bytes_accessed = 4 * (observation_z.size + action.size + packed["w_all"].size
                          + packed["bgb"].size + B * z_dim)

    # NOTE: final out_dim (=z_dim) < 128 lanes -> masked store, but fusion means
    # this is the only HBM writeback in the whole forward.
    return pl.pallas_call(
        kernel,
        out_shape=jax.ShapeDtypeStruct((B, z_dim), jnp.float32),
        grid=grid,
        in_specs=[
            pl.BlockSpec((TB, obs_len), lambda i: (i, 0)),
            pl.BlockSpec((TB, act_len), lambda i: (i, 0)),
            pl.BlockSpec(packed["w_all"].shape, lambda i: (0, 0)),   # VMEM-resident
            pl.BlockSpec(packed["bgb"].shape, lambda i: (0, 0)),     # VMEM-resident
        ],
        out_specs=pl.BlockSpec((TB, z_dim), lambda i: (i, 0)),
        compiler_params=pltpu.CompilerParams(
            dimension_semantics=("parallel",)),
        cost_estimate=pl.CostEstimate(
            flops=flops, transcendentals=transcendentals,
            bytes_accessed=bytes_accessed),
    )(observation_z, action, packed["w_all"], packed["bgb"])


# --------------------------- pure-JAX reference ----------------------------- #

def ofe_reference(phi_o, phi_ao, observation_z, action):
    def fc(p, x):
        y = x @ p["w"] + p["b"]
        y = jnp.where(y > 0, y, 0.01 * y)
        mean = jnp.mean(y, axis=-1, keepdims=True)
        cent = y - mean
        var = jnp.mean(cent * cent, axis=-1, keepdims=True)
        return cent * jax.lax.rsqrt(var + 1e-5) * p["gamma"] + p["beta"]

    o_begin = observation_z
    combined = o_begin
    output = None
    for p in phi_o:
        output = fc(p, combined)
        combined = jnp.concatenate([o_begin, output], axis=-1)
        o_begin = output
    oa_begin = jnp.concatenate([action, output], axis=-1)
    combined = oa_begin
    for p in phi_ao:
        output = fc(p, combined)
        combined = jnp.concatenate([oa_begin, output], axis=-1)
        oa_begin = output
    return output


# ---------------------------------- main ------------------------------------ #

if __name__ == "__main__":
    batch = 8
    observation_z_length = 24
    action_length = 6
    z_dimension = 32
    hidden_dimension = 32
    phi_o_hidden_layers = 3
    phi_ao_hidden_layers = 3

    key = jax.random.PRNGKey(0)
    k_params, k_obs, k_act = jax.random.split(key, 3)

    phi_o, phi_ao = init_ofe_params(
        k_params, observation_z_length, action_length, z_dimension,
        hidden_dimension, phi_o_hidden_layers, phi_ao_hidden_layers)
    packed = pack_ofe_params(phi_o, phi_ao)

    observation_z = jax.random.normal(k_obs, (batch, observation_z_length), jnp.float32)
    action = jax.random.normal(k_act, (batch, action_length), jnp.float32)

    out = ofe_forward(packed, observation_z, action)
    jax.block_until_ready(out)
    assert out.shape == (batch, z_dimension), out.shape

    ref = ofe_reference(phi_o, phi_ao, observation_z, action)
    max_err = float(jnp.max(jnp.abs(out - ref)))
    assert jnp.allclose(out, ref, atol=5e-2, rtol=5e-2), max_err

    print("KERNEL_OK")
</pallas_src>

<mosaic_0001>
module attributes {stable_mosaic.version = 11 : i64} {
  func.func @kernel(%arg0: i32, %arg1: memref<8x24xf32, #tpu.memory_space<vmem>>, %arg2: memref<8x6xf32, #tpu.memory_space<vmem>>, %arg3: memref<448x32xf32, #tpu.memory_space<vmem>>, %arg4: memref<24x32xf32, #tpu.memory_space<vmem>>, %arg5: memref<8x32xf32, #tpu.memory_space<vmem>>) attributes {dimension_semantics = [#tpu.dimension_semantics<parallel>], iteration_bounds = array<i64: 1>, scalar_prefetch = 0 : i64, scratch_operands = 0 : i64, tpu.core_type = #tpu.core_type<tc>, window_params = [{transform_indices = @transform_0, window_bounds = array<i64: 8, 24>}, {transform_indices = @transform_1, window_bounds = array<i64: 8, 6>}, {pipeline_mode = #tpu.pipeline_mode<synchronous>, transform_indices = @transform_2, window_bounds = array<i64: 448, 32>}, {pipeline_mode = #tpu.pipeline_mode<synchronous>, transform_indices = @transform_3, window_bounds = array<i64: 24, 32>}, {transform_indices = @transform_4, window_bounds = array<i64: 8, 32>}]} {
    %c0 = arith.constant 0 : index
    %c0_0 = arith.constant 0 : index
    %0 = vector.load %arg1[%c0, %c0_0] : memref<8x24xf32, #tpu.memory_space<vmem>>, vector<8x24xf32>
    %c0_1 = arith.constant 0 : index
    %c0_2 = arith.constant 0 : index
    %1 = vector.load %arg2[%c0_1, %c0_2] : memref<8x6xf32, #tpu.memory_space<vmem>>, vector<8x6xf32>
    %c0_3 = arith.constant 0 : index
    %c0_4 = arith.constant 0 : index
    %2 = vector.load %arg3[%c0_3, %c0_4] : memref<448x32xf32, #tpu.memory_space<vmem>>, vector<24x32xf32>
    %cst = arith.constant dense<0.000000e+00> : vector<8x32xf32>
    %3 = tpu.matmul %0, %2, %cst {dimension_numbers = #tpu.dot_dimension_numbers<[1], [0], [0], [1], [0, 0, 1, 1], [], []>} : vector<8x24xf32>, vector<24x32xf32>, vector<8x32xf32> -> vector<8x32xf32>
    %c0_5 = arith.constant 0 : index
    %c0_6 = arith.constant 0 : index
    %4 = vector.load %arg4[%c0_5, %c0_6] : memref<24x32xf32, #tpu.memory_space<vmem>>, vector<1x32xf32>
    %5 = vector.broadcast %4 : vector<1x32xf32> to vector<8x32xf32>
    %6 = arith.addf %3, %5 : vector<8x32xf32>
    %cst_7 = arith.constant 0.000000e+00 : f32
    %7 = vector.broadcast %cst_7 : f32 to vector<8x32xf32>
    %8 = arith.cmpf ogt, %6, %7 : vector<8x32xf32>
    %cst_8 = arith.constant 0.00999999977 : f32
    %9 = vector.broadcast %cst_8 : f32 to vector<8x32xf32>
    %10 = arith.mulf %9, %6 : vector<8x32xf32>
    %11 = arith.select %8, %6, %10 : vector<8x32xi1>, vector<8x32xf32>
    %cst_9 = arith.constant dense<0.000000e+00> : vector<8xf32>
    %12 = vector.multi_reduction <add>, %11, %cst_9 [1] : vector<8x32xf32> to vector<8xf32>
    %13 = vector.shape_cast %12 : vector<8xf32> to vector<8x1xf32>
    %cst_10 = arith.constant 3.200000e+01 : f32
    %14 = vector.broadcast %cst_10 : f32 to vector<8x1xf32>
    %15 = arith.divf %13, %14 : vector<8x1xf32>
    %16 = vector.broadcast %15 : vector<8x1xf32> to vector<8x32xf32>
    %17 = arith.subf %11, %16 : vector<8x32xf32>
    %18 = arith.mulf %17, %17 : vector<8x32xf32>
    %cst_11 = arith.constant dense<0.000000e+00> : vector<8xf32>
    %19 = vector.multi_reduction <add>, %18, %cst_11 [1] : vector<8x32xf32> to vector<8xf32>
    %20 = vector.shape_cast %19 : vector<8xf32> to vector<8x1xf32>
    %cst_12 = arith.constant 3.200000e+01 : f32
    %21 = vector.broadcast %cst_12 : f32 to vector<8x1xf32>
    %22 = arith.divf %20, %21 : vector<8x1xf32>
    %cst_13 = arith.constant 9.99999974E-6 : f32
    %23 = vector.broadcast %cst_13 : f32 to vector<8x1xf32>
    %24 = arith.addf %22, %23 : vector<8x1xf32>
    %25 = math.rsqrt %24 : vector<8x1xf32>
    %26 = vector.broadcast %25 : vector<8x1xf32> to vector<8x32xf32>
    %27 = arith.mulf %17, %26 : vector<8x32xf32>
    %c1 = arith.constant 1 : index
    %c0_14 = arith.constant 0 : index
    %28 = vector.load %arg4[%c1, %c0_14] : memref<24x32xf32, #tpu.memory_space<vmem>>, vector<1x32xf32>
    %29 = vector.broadcast %28 : vector<1x32xf32> to vector<8x32xf32>
    %30 = arith.mulf %27, %29 : vector<8x32xf32>
    %c2 = arith.constant 2 : index
    %c0_15 = arith.constant 0 : index
    %31 = vector.load %arg4[%c2, %c0_15] : memref<24x32xf32, #tpu.memory_space<vmem>>, vector<1x32xf32>
    %32 = vector.broadcast %31 : vector<1x32xf32> to vector<8x32xf32>
    %33 = arith.addf %30, %32 : vector<8x32xf32>
    %c24 = arith.constant 24 : index
    %c0_16 = arith.constant 0 : index
    %34 = vector.load %arg3[%c24, %c0_16] : memref<448x32xf32, #tpu.memory_space<vmem>>, vector<24x32xf32>
    %cst_17 = arith.constant dense<0.000000e+00> : vector<8x32xf32>
    %35 = tpu.matmul %0, %34, %cst_17 {dimension_numbers = #tpu.dot_dimension_numbers<[1], [0], [0], [1], [0, 0, 1, 1], [], []>} : vector<8x24xf32>, vector<24x32xf32>, vector<8x32xf32> -> vector<8x32xf32>
    %c48 = arith.constant 48 : index
    %c0_18 = arith.constant 0 : index
    %36 = vector.load %arg3[%c48, %c0_18] : memref<448x32xf32, #tpu.memory_space<vmem>>, vector<32x32xf32>
    %cst_19 = arith.constant dense<0.000000e+00> : vector<8x32xf32>
    %37 = tpu.matmul %33, %36, %cst_19 {dimension_numbers = #tpu.dot_dimension_numbers<[1], [0], [0], [1], [0, 0, 1, 1], [], []>} : vector<8x32xf32>, vector<32x32xf32>, vector<8x32xf32> -> vector<8x32xf32>
    %38 = arith.addf %35, %37 : vector<8x32xf32>
    %c3 = arith.constant 3 : index
    %c0_20 = arith.constant 0 : index
    %39 = vector.load %arg4[%c3, %c0_20] : memref<24x32xf32, #tpu.memory_space<vmem>>, vector<1x32xf32>
    %40 = vector.broadcast %39 : vector<1x32xf32> to vector<8x32xf32>
    %41 = arith.addf %38, %40 : vector<8x32xf32>
    %cst_21 = arith.constant 0.000000e+00 : f32
    %42 = vector.broadcast %cst_21 : f32 to vector<8x32xf32>
    %43 = arith.cmpf ogt, %41, %42 : vector<8x32xf32>
    %cst_22 = arith.constant 0.00999999977 : f32
    %44 = vector.broadcast %cst_22 : f32 to vector<8x32xf32>
    %45 = arith.mulf %44, %41 : vector<8x32xf32>
    %46 = arith.select %43, %41, %45 : vector<8x32xi1>, vector<8x32xf32>
    %cst_23 = arith.constant dense<0.000000e+00> : vector<8xf32>
    %47 = vector.multi_reduction <add>, %46, %cst_23 [1] : vector<8x32xf32> to vector<8xf32>
    %48 = vector.shape_cast %47 : vector<8xf32> to vector<8x1xf32>
    %cst_24 = arith.constant 3.200000e+01 : f32
    %49 = vector.broadcast %cst_24 : f32 to vector<8x1xf32>
    %50 = arith.divf %48, %49 : vector<8x1xf32>
    %51 = vector.broadcast %50 : vector<8x1xf32> to vector<8x32xf32>
    %52 = arith.subf %46, %51 : vector<8x32xf32>
    %53 = arith.mulf %52, %52 : vector<8x32xf32>
    %cst_25 = arith.constant dense<0.000000e+00> : vector<8xf32>
    %54 = vector.multi_reduction <add>, %53, %cst_25 [1] : vector<8x32xf32> to vector<8xf32>
    %55 = vector.shape_cast %54 : vector<8xf32> to vector<8x1xf32>
    %cst_26 = arith.constant 3.200000e+01 : f32
    %56 = vector.broadcast %cst_26 : f32 to vector<8x1xf32>
    %57 = arith.divf %55, %56 : vector<8x1xf32>
    %cst_27 = arith.constant 9.99999974E-6 : f32
    %58 = vector.broadcast %cst_27 : f32 to vector<8x1xf32>
    %59 = arith.addf %57, %58 : vector<8x1xf32>
    %60 = math.rsqrt %59 : vector<8x1xf32>
    %61 = vector.broadcast %60 : vector<8x1xf32> to vector<8x32xf32>
    %62 = arith.mulf %52, %61 : vector<8x32xf32>
    %c4 = arith.constant 4 : index
    %c0_28 = arith.constant 0 : index
    %63 = vector.load %arg4[%c4, %c0_28] : memref<24x32xf32, #tpu.memory_space<vmem>>, vector<1x32xf32>
    %64 = vector.broadcast %63 : vector<1x32xf32> to vector<8x32xf32>
    %65 = arith.mulf %62, %64 : vector<8x32xf32>
    %c5 = arith.constant 5 : index
    %c0_29 = arith.constant 0 : index
    %66 = vector.load %arg4[%c5, %c0_29] : memref<24x32xf32, #tpu.memory_space<vmem>>, vector<1x32xf32>
    %67 = vector.broadcast %66 : vector<1x32xf32> to vector<8x32xf32>
    %68 = arith.addf %65, %67 : vector<8x32xf32>
    %c80 = arith.constant 80 : index
    %c0_30 = arith.constant 0 : index
    %69 = vector.load %arg3[%c80, %c0_30] : memref<448x32xf32, #tpu.memory_space<vmem>>, vector<32x32xf32>
    %cst_31 = arith.constant dense<0.000000e+00> : vector<8x32xf32>
    %70 = tpu.matmul %33, %69, %cst_31 {dimension_numbers = #tpu.dot_dimension_numbers<[1], [0], [0], [1], [0, 0, 1, 1], [], []>} : vector<8x32xf32>, vector<32x32xf32>, vector<8x32xf32> -> vector<8x32xf32>
    %c112 = arith.constant 112 : index
    %c0_32 = arith.constant 0 : index
    %71 = vector.load %arg3[%c112, %c0_32] : memref<448x32xf32, #tpu.memory_space<vmem>>, vector<32x32xf32>
    %cst_33 = arith.constant dense<0.000000e+00> : vector<8x32xf32>
    %72 = tpu.matmul %68, %71, %cst_33 {dimension_numbers = #tpu.dot_dimension_numbers<[1], [0], [0], [1], [0, 0, 1, 1], [], []>} : vector<8x32xf32>, vector<32x32xf32>, vector<8x32xf32> -> vector<8x32xf32>
    %73 = arith.addf %70, %72 : vector<8x32xf32>
    %c6 = arith.constant 6 : index
    %c0_34 = arith.constant 0 : index
    %74 = vector.load %arg4[%c6, %c0_34] : memref<24x32xf32, #tpu.memory_space<vmem>>, vector<1x32xf32>
    %75 = vector.broadcast %74 : vector<1x32xf32> to vector<8x32xf32>
    %76 = arith.addf %73, %75 : vector<8x32xf32>
    %cst_35 = arith.constant 0.000000e+00 : f32
    %77 = vector.broadcast %cst_35 : f32 to vector<8x32xf32>
    %78 = arith.cmpf ogt, %76, %77 : vector<8x32xf32>
    %cst_36 = arith.constant 0.00999999977 : f32
    %79 = vector.broadcast %cst_36 : f32 to vector<8x32xf32>
    %80 = arith.mulf %79, %76 : vector<8x32xf32>
    %81 = arith.select %78, %76, %80 : vector<8x32xi1>, vector<8x32xf32>
    %cst_37 = arith.constant dense<0.000000e+00> : vector<8xf32>
    %82 = vector.multi_reduction <add>, %81, %cst_37 [1] : vector<8x32xf32> to vector<8xf32>
    %83 = vector.shape_cast %82 : vector<8xf32> to vector<8x1xf32>
    %cst_38 = arith.constant 3.200000e+01 : f32
    %84 = vector.broadcast %cst_38 : f32 to vector<8x1xf32>
    %85 = arith.divf %83, %84 : vector<8x1xf32>
    %86 = vector.broadcast %85 : vector<8x1xf32> to vector<8x32xf32>
    %87 = arith.subf %81, %86 : vector<8x32xf32>
    %88 = arith.mulf %87, %87 : vector<8x32xf32>
    %cst_39 = arith.constant dense<0.000000e+00> : vector<8xf32>
    %89 = vector.multi_reduction <add>, %88, %cst_39 [1] : vector<8x32xf32> to vector<8xf32>
    %90 = vector.shape_cast %89 : vector<8xf32> to vector<8x1xf32>
    %cst_40 = arith.constant 3.200000e+01 : f32
    %91 = vector.broadcast %cst_40 : f32 to vector<8x1xf32>
    %92 = arith.divf %90, %91 : vector<8x1xf32>
    %cst_41 = arith.constant 9.99999974E-6 : f32
    %93 = vector.broadcast %cst_41 : f32 to vector<8x1xf32>
    %94 = arith.addf %92, %93 : vector<8x1xf32>
    %95 = math.rsqrt %94 : vector<8x1xf32>
    %96 = vector.broadcast %95 : vector<8x1xf32> to vector<8x32xf32>
    %97 = arith.mulf %87, %96 : vector<8x32xf32>
    %c7 = arith.constant 7 : index
    %c0_42 = arith.constant 0 : index
    %98 = vector.load %arg4[%c7, %c0_42] : memref<24x32xf32, #tpu.memory_space<vmem>>, vector<1x32xf32>
    %99 = vector.broadcast %98 : vector<1x32xf32> to vector<8x32xf32>
    %100 = arith.mulf %97, %99 : vector<8x32xf32>
    %c8 = arith.constant 8 : index
    %c0_43 = arith.constant 0 : index
    %101 = vector.load %arg4[%c8, %c0_43] : memref<24x32xf32, #tpu.memory_space<vmem>>, vector<1x32xf32>
    %102 = vector.broadcast %101 : vector<1x32xf32> to vector<8x32xf32>
    %103 = arith.addf %100, %102 : vector<8x32xf32>
    %c144 = arith.constant 144 : index
    %c0_44 = arith.constant 0 : index
    %104 = vector.load %arg3[%c144, %c0_44] : memref<448x32xf32, #tpu.memory_space<vmem>>, vector<6x32xf32>
    %cst_45 = arith.constant dense<0.000000e+00> : vector<8x32xf32>
    %105 = tpu.matmul %1, %104, %cst_45 {dimension_numbers = #tpu.dot_dimension_numbers<[1], [0], [0], [1], [0, 0, 1, 1], [], []>} : vector<8x6xf32>, vector<6x32xf32>, vector<8x32xf32> -> vector<8x32xf32>
    %c152 = arith.constant 152 : index
    %c0_46 = arith.constant 0 : index
    %106 = vector.load %arg3[%c152, %c0_46] : memref<448x32xf32, #tpu.memory_space<vmem>>, vector<32x32xf32>
    %cst_47 = arith.constant dense<0.000000e+00> : vector<8x32xf32>
    %107 = tpu.matmul %103, %106, %cst_47 {dimension_numbers = #tpu.dot_dimension_numbers<[1], [0], [0], [1], [0, 0, 1, 1], [], []>} : vector<8x32xf32>, vector<32x32xf32>, vector<8x32xf32> -> vector<8x32xf32>
    %108 = arith.addf %105, %107 : vector<8x32xf32>
    %c9 = arith.constant 9 : index
    %c0_48 = arith.constant 0 : index
    %109 = vector.load %arg4[%c9, %c0_48] : memref<24x32xf32, #tpu.memory_space<vmem>>, vector<1x32xf32>
    %110 = vector.broadcast %109 : vector<1x32xf32> to vector<8x32xf32>
    %111 = arith.addf %108, %110 : vector<8x32xf32>
    %cst_49 = arith.constant 0.000000e+00 : f32
    %112 = vector.broadcast %cst_49 : f32 to vector<8x32xf32>
    %113 = arith.cmpf ogt, %111, %112 : vector<8x32xf32>
    %cst_50 = arith.constant 0.00999999977 : f32
    %114 = vector.broadcast %cst_50 : f32 to vector<8x32xf32>
    %115 = arith.mulf %114, %111 : vector<8x32xf32>
    %116 = arith.select %113, %111, %115 : vector<8x32xi1>, vector<8x32xf32>
    %cst_51 = arith.constant dense<0.000000e+00> : vector<8xf32>
    %117 = vector.multi_reduction <add>, %116, %cst_51 [1] : vector<8x32xf32> to vector<8xf32>
    %118 = vector.shape_cast %117 : vector<8xf32> to vector<8x1xf32>
    %cst_52 = arith.constant 3.200000e+01 : f32
    %119 = vector.broadcast %cst_52 : f32 to vector<8x1xf32>
    %120 = arith.divf %118, %119 : vector<8x1xf32>
    %121 = vector.broadcast %120 : vector<8x1xf32> to vector<8x32xf32>
    %122 = arith.subf %116, %121 : vector<8x32xf32>
    %123 = arith.mulf %122, %122 : vector<8x32xf32>
    %cst_53 = arith.constant dense<0.000000e+00> : vector<8xf32>
    %124 = vector.multi_reduction <add>, %123, %cst_53 [1] : vector<8x32xf32> to vector<8xf32>
    %125 = vector.shape_cast %124 : vector<8xf32> to vector<8x1xf32>
    %cst_54 = arith.constant 3.200000e+01 : f32
    %126 = vector.broadcast %cst_54 : f32 to vector<8x1xf32>
    %127 = arith.divf %125, %126 : vector<8x1xf32>
    %cst_55 = arith.constant 9.99999974E-6 : f32
    %128 = vector.broadcast %cst_55 : f32 to vector<8x1xf32>
    %129 = arith.addf %127, %128 : vector<8x1xf32>
    %130 = math.rsqrt %129 : vector<8x1xf32>
    %131 = vector.broadcast %130 : vector<8x1xf32> to vector<8x32xf32>
    %132 = arith.mulf %122, %131 : vector<8x32xf32>
    %c10 = arith.constant 10 : index
    %c0_56 = arith.constant 0 : index
    %133 = vector.load %arg4[%c10, %c0_56] : memref<24x32xf32, #tpu.memory_space<vmem>>, vector<1x32xf32>
    %134 = vector.broadcast %133 : vector<1x32xf32> to vector<8x32xf32>
    %135 = arith.mulf %132, %134 : vector<8x32xf32>
    %c11 = arith.constant 11 : index
    %c0_57 = arith.constant 0 : index
    %136 = vector.load %arg4[%c11, %c0_57] : memref<24x32xf32, #tpu.memory_space<vmem>>, vector<1x32xf32>
    %137 = vector.broadcast %136 : vector<1x32xf32> to vector<8x32xf32>
    %138 = arith.addf %135, %137 : vector<8x32xf32>
    %c184 = arith.constant 184 : index
    %c0_58 = arith.constant 0 : index
    %139 = vector.load %arg3[%c184, %c0_58] : memref<448x32xf32, #tpu.memory_space<vmem>>, vector<6x32xf32>
    %cst_59 = arith.constant dense<0.000000e+00> : vector<8x32xf32>
    %140 = tpu.matmul %1, %139, %cst_59 {dimension_numbers = #tpu.dot_dimension_numbers<[1], [0], [0], [1], [0, 0, 1, 1], [], []>} : vector<8x6xf32>, vector<6x32xf32>, vector<8x32xf32> -> vector<8x32xf32>
    %c192 = arith.constant 192 : index
    %c0_60 = arith.constant 0 : index
    %141 = vector.load %arg3[%c192, %c0_60] : memref<448x32xf32, #tpu.memory_space<vmem>>, vector<32x32xf32>
    %cst_61 = arith.constant dense<0.000000e+00> : vector<8x32xf32>
    %142 = tpu.matmul %103, %141, %cst_61 {dimension_numbers = #tpu.dot_dimension_numbers<[1], [0], [0], [1], [0, 0, 1, 1], [], []>} : vector<8x32xf32>, vector<32x32xf32>, vector<8x32xf32> -> vector<8x32xf32>
    %143 = arith.addf %140, %142 : vector<8x32xf32>
    %c224 = arith.constant 224 : index
    %c0_62 = arith.constant 0 : index
    %144 = vector.load %arg3[%c224, %c0_62] : memref<448x32xf32, #tpu.memory_space<vmem>>, vector<32x32xf32>
    %cst_63 = arith.constant dense<0.000000e+00> : vector<8x32xf32>
    %145 = tpu.matmul %138, %144, %cst_63 {dimension_numbers = #tpu.dot_dimension_numbers<[1], [0], [0], [1], [0, 0, 1, 1], [], []>} : vector<8x32xf32>, vector<32x32xf32>, vector<8x32xf32> -> vector<8x32xf32>
    %146 = arith.addf %143, %145 : vector<8x32xf32>
    %c12 = arith.constant 12 : index
    %c0_64 = arith.constant 0 : index
    %147 = vector.load %arg4[%c12, %c0_64] : memref<24x32xf32, #tpu.memory_space<vmem>>, vector<1x32xf32>
    %148 = vector.broadcast %147 : vector<1x32xf32> to vector<8x32xf32>
    %149 = arith.addf %146, %148 : vector<8x32xf32>
    %cst_65 = arith.constant 0.000000e+00 : f32
    %150 = vector.broadcast %cst_65 : f32 to vector<8x32xf32>
    %151 = arith.cmpf ogt, %149, %150 : vector<8x32xf32>
    %cst_66 = arith.constant 0.00999999977 : f32
    %152 = vector.broadcast %cst_66 : f32 to vector<8x32xf32>
    %153 = arith.mulf %152, %149 : vector<8x32xf32>
    %154 = arith.select %151, %149, %153 : vector<8x32xi1>, vector<8x32xf32>
    %cst_67 = arith.constant dense<0.000000e+00> : vector<8xf32>
    %155 = vector.multi_reduction <add>, %154, %cst_67 [1] : vector<8x32xf32> to vector<8xf32>
    %156 = vector.shape_cast %155 : vector<8xf32> to vector<8x1xf32>
    %cst_68 = arith.constant 3.200000e+01 : f32
    %157 = vector.broadcast %cst_68 : f32 to vector<8x1xf32>
    %158 = arith.divf %156, %157 : vector<8x1xf32>
    %159 = vector.broadcast %158 : vector<8x1xf32> to vector<8x32xf32>
    %160 = arith.subf %154, %159 : vector<8x32xf32>
    %161 = arith.mulf %160, %160 : vector<8x32xf32>
    %cst_69 = arith.constant dense<0.000000e+00> : vector<8xf32>
    %162 = vector.multi_reduction <add>, %161, %cst_69 [1] : vector<8x32xf32> to vector<8xf32>
    %163 = vector.shape_cast %162 : vector<8xf32> to vector<8x1xf32>
    %cst_70 = arith.constant 3.200000e+01 : f32
    %164 = vector.broadcast %cst_70 : f32 to vector<8x1xf32>
    %165 = arith.divf %163, %164 : vector<8x1xf32>
    %cst_71 = arith.constant 9.99999974E-6 : f32
    %166 = vector.broadcast %cst_71 : f32 to vector<8x1xf32>
    %167 = arith.addf %165, %166 : vector<8x1xf32>
    %168 = math.rsqrt %167 : vector<8x1xf32>
    %169 = vector.broadcast %168 : vector<8x1xf32> to vector<8x32xf32>
    %170 = arith.mulf %160, %169 : vector<8x32xf32>
    %c13 = arith.constant 13 : index
    %c0_72 = arith.constant 0 : index
    %171 = vector.load %arg4[%c13, %c0_72] : memref<24x32xf32, #tpu.memory_space<vmem>>, vector<1x32xf32>
    %172 = vector.broadcast %171 : vector<1x32xf32> to vector<8x32xf32>
    %173 = arith.mulf %170, %172 : vector<8x32xf32>
    %c14 = arith.constant 14 : index
    %c0_73 = arith.constant 0 : index
    %174 = vector.load %arg4[%c14, %c0_73] : memref<24x32xf32, #tpu.memory_space<vmem>>, vector<1x32xf32>
    %175 = vector.broadcast %174 : vector<1x32xf32> to vector<8x32xf32>
    %176 = arith.addf %173, %175 : vector<8x32xf32>
    %c256 = arith.constant 256 : index
    %c0_74 = arith.constant 0 : index
    %177 = vector.load %arg3[%c256, %c0_74] : memref<448x32xf32, #tpu.memory_space<vmem>>, vector<32x32xf32>
    %cst_75 = arith.constant dense<0.000000e+00> : vector<8x32xf32>
    %178 = tpu.matmul %138, %177, %cst_75 {dimension_numbers = #tpu.dot_dimension_numbers<[1], [0], [0], [1], [0, 0, 1, 1], [], []>} : vector<8x32xf32>, vector<32x32xf32>, vector<8x32xf32> -> vector<8x32xf32>
    %c288 = arith.constant 288 : index
    %c0_76 = arith.constant 0 : index
    %179 = vector.load %arg3[%c288, %c0_76] : memref<448x32xf32, #tpu.memory_space<vmem>>, vector<32x32xf32>
    %cst_77 = arith.constant dense<0.000000e+00> : vector<8x32xf32>
    %180 = tpu.matmul %176, %179, %cst_77 {dimension_numbers = #tpu.dot_dimension_numbers<[1], [0], [0], [1], [0, 0, 1, 1], [], []>} : vector<8x32xf32>, vector<32x32xf32>, vector<8x32xf32> -> vector<8x32xf32>
    %181 = arith.addf %178, %180 : vector<8x32xf32>
    %c15 = arith.constant 15 : index
    %c0_78 = arith.constant 0 : index
    %182 = vector.load %arg4[%c15, %c0_78] : memref<24x32xf32, #tpu.memory_space<vmem>>, vector<1x32xf32>
    %183 = vector.broadcast %182 : vector<1x32xf32> to vector<8x32xf32>
    %184 = arith.addf %181, %183 : vector<8x32xf32>
    %cst_79 = arith.constant 0.000000e+00 : f32
    %185 = vector.broadcast %cst_79 : f32 to vector<8x32xf32>
    %186 = arith.cmpf ogt, %184, %185 : vector<8x32xf32>
    %cst_80 = arith.constant 0.00999999977 : f32
    %187 = vector.broadcast %cst_80 : f32 to vector<8x32xf32>
    %188 = arith.mulf %187, %184 : vector<8x32xf32>
    %189 = arith.select %186, %184, %188 : vector<8x32xi1>, vector<8x32xf32>
    %cst_81 = arith.constant dense<0.000000e+00> : vector<8xf32>
    %190 = vector.multi_reduction <add>, %189, %cst_81 [1] : vector<8x32xf32> to vector<8xf32>
    %191 = vector.shape_cast %190 : vector<8xf32> to vector<8x1xf32>
    %cst_82 = arith.constant 3.200000e+01 : f32
    %192 = vector.broadcast %cst_82 : f32 to vector<8x1xf32>
    %193 = arith.divf %191, %192 : vector<8x1xf32>
    %194 = vector.broadcast %193 : vector<8x1xf32> to vector<8x32xf32>
    %195 = arith.subf %189, %194 : vector<8x32xf32>
    %196 = arith.mulf %195, %195 : vector<8x32xf32>
    %cst_83 = arith.constant dense<0.000000e+00> : vector<8xf32>
    %197 = vector.multi_reduction <add>, %196, %cst_83 [1] : vector<8x32xf32> to vector<8xf32>
    %198 = vector.shape_cast %197 : vector<8xf32> to vector<8x1xf32>
    %cst_84 = arith.constant 3.200000e+01 : f32
    %199 = vector.broadcast %cst_84 : f32 to vector<8x1xf32>
    %200 = arith.divf %198, %199 : vector<8x1xf32>
    %cst_85 = arith.constant 9.99999974E-6 : f32
    %201 = vector.broadcast %cst_85 : f32 to vector<8x1xf32>
    %202 = arith.addf %200, %201 : vector<8x1xf32>
    %203 = math.rsqrt %202 : vector<8x1xf32>
    %204 = vector.broadcast %203 : vector<8x1xf32> to vector<8x32xf32>
    %205 = arith.mulf %195, %204 : vector<8x32xf32>
    %c16 = arith.constant 16 : index
    %c0_86 = arith.constant 0 : index
    %206 = vector.load %arg4[%c16, %c0_86] : memref<24x32xf32, #tpu.memory_space<vmem>>, vector<1x32xf32>
    %207 = vector.broadcast %206 : vector<1x32xf32> to vector<8x32xf32>
    %208 = arith.mulf %205, %207 : vector<8x32xf32>
    %c17 = arith.constant 17 : index
    %c0_87 = arith.constant 0 : index
    %209 = vector.load %arg4[%c17, %c0_87] : memref<24x32xf32, #tpu.memory_space<vmem>>, vector<1x32xf32>
    %210 = vector.broadcast %209 : vector<1x32xf32> to vector<8x32xf32>
    %211 = arith.addf %208, %210 : vector<8x32xf32>
    %c320 = arith.constant 320 : index
    %c0_88 = arith.constant 0 : index
    %212 = vector.load %arg3[%c320, %c0_88] : memref<448x32xf32, #tpu.memory_space<vmem>>, vector<32x32xf32>
    %cst_89 = arith.constant dense<0.000000e+00> : vector<8x32xf32>
    %213 = tpu.matmul %176, %212, %cst_89 {dimension_numbers = #tpu.dot_dimension_numbers<[1], [0], [0], [1], [0, 0, 1, 1], [], []>} : vector<8x32xf32>, vector<32x32xf32>, vector<8x32xf32> -> vector<8x32xf32>
    %c352 = arith.constant 352 : index
    %c0_90 = arith.constant 0 : index
    %214 = vector.load %arg3[%c352, %c0_90] : memref<448x32xf32, #tpu.memory_space<vmem>>, vector<32x32xf32>
    %cst_91 = arith.constant dense<0.000000e+00> : vector<8x32xf32>
    %215 = tpu.matmul %211, %214, %cst_91 {dimension_numbers = #tpu.dot_dimension_numbers<[1], [0], [0], [1], [0, 0, 1, 1], [], []>} : vector<8x32xf32>, vector<32x32xf32>, vector<8x32xf32> -> vector<8x32xf32>
    %216 = arith.addf %213, %215 : vector<8x32xf32>
    %c18 = arith.constant 18 : index
    %c0_92 = arith.constant 0 : index
    %217 = vector.load %arg4[%c18, %c0_92] : memref<24x32xf32, #tpu.memory_space<vmem>>, vector<1x32xf32>
    %218 = vector.broadcast %217 : vector<1x32xf32> to vector<8x32xf32>
    %219 = arith.addf %216, %218 : vector<8x32xf32>
    %cst_93 = arith.constant 0.000000e+00 : f32
    %220 = vector.broadcast %cst_93 : f32 to vector<8x32xf32>
    %221 = arith.cmpf ogt, %219, %220 : vector<8x32xf32>
    %cst_94 = arith.constant 0.00999999977 : f32
    %222 = vector.broadcast %cst_94 : f32 to vector<8x32xf32>
    %223 = arith.mulf %222, %219 : vector<8x32xf32>
    %224 = arith.select %221, %219, %223 : vector<8x32xi1>, vector<8x32xf32>
    %cst_95 = arith.constant dense<0.000000e+00> : vector<8xf32>
    %225 = vector.multi_reduction <add>, %224, %cst_95 [1] : vector<8x32xf32> to vector<8xf32>
    %226 = vector.shape_cast %225 : vector<8xf32> to vector<8x1xf32>
    %cst_96 = arith.constant 3.200000e+01 : f32
    %227 = vector.broadcast %cst_96 : f32 to vector<8x1xf32>
    %228 = arith.divf %226, %227 : vector<8x1xf32>
    %229 = vector.broadcast %228 : vector<8x1xf32> to vector<8x32xf32>
    %230 = arith.subf %224, %229 : vector<8x32xf32>
    %231 = arith.mulf %230, %230 : vector<8x32xf32>
    %cst_97 = arith.constant dense<0.000000e+00> : vector<8xf32>
    %232 = vector.multi_reduction <add>, %231, %cst_97 [1] : vector<8x32xf32> to vector<8xf32>
    %233 = vector.shape_cast %232 : vector<8xf32> to vector<8x1xf32>
    %cst_98 = arith.constant 3.200000e+01 : f32
    %234 = vector.broadcast %cst_98 : f32 to vector<8x1xf32>
    %235 = arith.divf %233, %234 : vector<8x1xf32>
    %cst_99 = arith.constant 9.99999974E-6 : f32
    %236 = vector.broadcast %cst_99 : f32 to vector<8x1xf32>
    %237 = arith.addf %235, %236 : vector<8x1xf32>
    %238 = math.rsqrt %237 : vector<8x1xf32>
    %239 = vector.broadcast %238 : vector<8x1xf32> to vector<8x32xf32>
    %240 = arith.mulf %230, %239 : vector<8x32xf32>
    %c19 = arith.constant 19 : index
    %c0_100 = arith.constant 0 : index
    %241 = vector.load %arg4[%c19, %c0_100] : memref<24x32xf32, #tpu.memory_space<vmem>>, vector<1x32xf32>
    %242 = vector.broadcast %241 : vector<1x32xf32> to vector<8x32xf32>
    %243 = arith.mulf %240, %242 : vector<8x32xf32>
    %c20 = arith.constant 20 : index
    %c0_101 = arith.constant 0 : index
    %244 = vector.load %arg4[%c20, %c0_101] : memref<24x32xf32, #tpu.memory_space<vmem>>, vector<1x32xf32>
    %245 = vector.broadcast %244 : vector<1x32xf32> to vector<8x32xf32>
    %246 = arith.addf %243, %245 : vector<8x32xf32>
    %c384 = arith.constant 384 : index
    %c0_102 = arith.constant 0 : index
    %247 = vector.load %arg3[%c384, %c0_102] : memref<448x32xf32, #tpu.memory_space<vmem>>, vector<32x32xf32>
    %cst_103 = arith.constant dense<0.000000e+00> : vector<8x32xf32>
    %248 = tpu.matmul %211, %247, %cst_103 {dimension_numbers = #tpu.dot_dimension_numbers<[1], [0], [0], [1], [0, 0, 1, 1], [], []>} : vector<8x32xf32>, vector<32x32xf32>, vector<8x32xf32> -> vector<8x32xf32>
    %c416 = arith.constant 416 : index
    %c0_104 = arith.constant 0 : index
    %249 = vector.load %arg3[%c416, %c0_104] : memref<448x32xf32, #tpu.memory_space<vmem>>, vector<32x32xf32>
    %cst_105 = arith.constant dense<0.000000e+00> : vector<8x32xf32>
    %250 = tpu.matmul %246, %249, %cst_105 {dimension_numbers = #tpu.dot_dimension_numbers<[1], [0], [0], [1], [0, 0, 1, 1], [], []>} : vector<8x32xf32>, vector<32x32xf32>, vector<8x32xf32> -> vector<8x32xf32>
    %251 = arith.addf %248, %250 : vector<8x32xf32>
    %c21 = arith.constant 21 : index
    %c0_106 = arith.constant 0 : index
    %252 = vector.load %arg4[%c21, %c0_106] : memref<24x32xf32, #tpu.memory_space<vmem>>, vector<1x32xf32>
    %253 = vector.broadcast %252 : vector<1x32xf32> to vector<8x32xf32>
    %254 = arith.addf %251, %253 : vector<8x32xf32>
    %cst_107 = arith.constant 0.000000e+00 : f32
    %255 = vector.broadcast %cst_107 : f32 to vector<8x32xf32>
    %256 = arith.cmpf ogt, %254, %255 : vector<8x32xf32>
    %cst_108 = arith.constant 0.00999999977 : f32
    %257 = vector.broadcast %cst_108 : f32 to vector<8x32xf32>
    %258 = arith.mulf %257, %254 : vector<8x32xf32>
    %259 = arith.select %256, %254, %258 : vector<8x32xi1>, vector<8x32xf32>
    %cst_109 = arith.constant dense<0.000000e+00> : vector<8xf32>
    %260 = vector.multi_reduction <add>, %259, %cst_109 [1] : vector<8x32xf32> to vector<8xf32>
    %261 = vector.shape_cast %260 : vector<8xf32> to vector<8x1xf32>
    %cst_110 = arith.constant 3.200000e+01 : f32
    %262 = vector.broadcast %cst_110 : f32 to vector<8x1xf32>
    %263 = arith.divf %261, %262 : vector<8x1xf32>
    %264 = vector.broadcast %263 : vector<8x1xf32> to vector<8x32xf32>
    %265 = arith.subf %259, %264 : vector<8x32xf32>
    %266 = arith.mulf %265, %265 : vector<8x32xf32>
    %cst_111 = arith.constant dense<0.000000e+00> : vector<8xf32>
    %267 = vector.multi_reduction <add>, %266, %cst_111 [1] : vector<8x32xf32> to vector<8xf32>
    %268 = vector.shape_cast %267 : vector<8xf32> to vector<8x1xf32>
    %cst_112 = arith.constant 3.200000e+01 : f32
    %269 = vector.broadcast %cst_112 : f32 to vector<8x1xf32>
    %270 = arith.divf %268, %269 : vector<8x1xf32>
    %cst_113 = arith.constant 9.99999974E-6 : f32
    %271 = vector.broadcast %cst_113 : f32 to vector<8x1xf32>
    %272 = arith.addf %270, %271 : vector<8x1xf32>
    %273 = math.rsqrt %272 : vector<8x1xf32>
    %274 = vector.broadcast %273 : vector<8x1xf32> to vector<8x32xf32>
    %275 = arith.mulf %265, %274 : vector<8x32xf32>
    %c22 = arith.constant 22 : index
    %c0_114 = arith.constant 0 : index
    %276 = vector.load %arg4[%c22, %c0_114] : memref<24x32xf32, #tpu.memory_space<vmem>>, vector<1x32xf32>
    %277 = vector.broadcast %276 : vector<1x32xf32> to vector<8x32xf32>
    %278 = arith.mulf %275, %277 : vector<8x32xf32>
    %c23 = arith.constant 23 : index
    %c0_115 = arith.constant 0 : index
    %279 = vector.load %arg4[%c23, %c0_115] : memref<24x32xf32, #tpu.memory_space<vmem>>, vector<1x32xf32>
    %280 = vector.broadcast %279 : vector<1x32xf32> to vector<8x32xf32>
    %281 = arith.addf %278, %280 : vector<8x32xf32>
    %c0_116 = arith.constant 0 : index
    %c0_117 = arith.constant 0 : index
    %282 = vector.load %arg5[%c0_116, %c0_117] : memref<8x32xf32, #tpu.memory_space<vmem>>, vector<8x32xf32>
    tpu.vector_store %arg5[%c0_116, %c0_117], %281 {strides = array<i32>} : memref<8x32xf32, #tpu.memory_space<vmem>>, vector<8x32xf32>,
    return
  }
  func.func @transform_0(%arg0: i32) -> (i32, i32) {
    %c0_i32 = arith.constant 0 : i32
    %c0_i32_0 = arith.constant 0 : i32
    return %arg0, %c0_i32 : i32, i32
  }
  func.func @transform_1(%arg0: i32) -> (i32, i32) {
    %c0_i32 = arith.constant 0 : i32
    %c0_i32_0 = arith.constant 0 : i32
    return %arg0, %c0_i32 : i32, i32
  }
  func.func @transform_2(%arg0: i32) -> (i32, i32) {
    %c0_i32 = arith.constant 0 : i32
    %c0_i32_0 = arith.constant 0 : i32
    %c0_i32_1 = arith.constant 0 : i32
    return %c0_i32, %c0_i32_0 : i32, i32
  }
  func.func @transform_3(%arg0: i32) -> (i32, i32) {
    %c0_i32 = arith.constant 0 : i32
    %c0_i32_0 = arith.constant 0 : i32
    %c0_i32_1 = arith.constant 0 : i32
    return %c0_i32, %c0_i32_0 : i32, i32
  }
  func.func @transform_4(%arg0: i32) -> (i32, i32) {
    %c0_i32 = arith.constant 0 : i32
    %c0_i32_0 = arith.constant 0 : i32
    return %arg0, %c0_i32 : i32, i32
  }
}

</mosaic_0001>

<llo_original>
// kernel: tpu_custom_call.1
$region0: #{tpu_custom_call.1}
  #allocation0 [shape = 'u32[]', space=smem, size = 0x4, offset = 0x4, fixed_abs, tag = 'smem constant byte address 0x4 - core index']
  #allocation1 [shape = 'u32[144,128]{1,0:T(1,128)}', space=vmem, size = 0x12000, scoped, tag = 'internal scratch']
  %s0 = inlined_call_operand.vmem [shape: f32[8,24], index: 0, kind: input, shape index: {}]
  %s1 = inlined_call_operand.vmem [shape: f32[8,6], index: 1, kind: input, shape index: {}]
  %s2 = inlined_call_operand.vmem [shape: f32[448,32], index: 2, kind: input, shape index: {}]
  %s3 = inlined_call_operand.vmem [shape: f32[24,32], index: 3, kind: input, shape index: {}]
  %s4 = inlined_call_operand.hbm [shape: f32[8,32], index: 4, kind: output, shape index: {}]
  %s5 = sld [smem:[#allocation0]]
  $region26: #{tpu_custom_call.1} parent=0
    _
  %s7 = ssub.s32 1, %s5
  %s8 = scalar_select 0, %s7, %s5
  $region1: #{tpu_custom_call.1} parent=0
    #allocation2 [shape = 'u8[4096]{0}', space=vmem, size = 0x1000, scoped, tag = 'output window, operand 0, single buffered']
    #allocation3 [shape = 's32[1]{0}', space=sflag, size = 0x4, scoped, tag = 'scoped memory for tpu_custom_call.1']
    %9 = vsyncpa [#allocation3], 0
    // Predicated region
    $region2: #{tpu_custom_call.1} parent=1 // pred_check
      _
    $region3: #{tpu_custom_call.1} parent=1 // pred_check_branch
      %11 = sbr.rel (0) target = $region5
    $region4: #{tpu_custom_call.1} parent=1 // pred_region
      _
    $region5: #{tpu_custom_call.1} parent=1 // pred_fallthru
      _
    // Predicated region
    $region6: #{tpu_custom_call.1} parent=1 // pred_check
      _
    $region7: #{tpu_custom_call.1} parent=1 // pred_check_branch
      %13 = sbr.rel (0) target = $region9
    $region8: #{tpu_custom_call.1} parent=1 // pred_region
      _
    $region9: #{tpu_custom_call.1} parent=1 // pred_fallthru
      _
    // Predicated region
    $region10: #{tpu_custom_call.1} parent=1 // pred_check
      _
    $region11: #{tpu_custom_call.1} parent=1 // pred_check_branch
      %15 = sbr.rel (0) target = $region13
    $region12: #{tpu_custom_call.1} parent=1 // pred_region
      _
    $region13: #{tpu_custom_call.1} parent=1 // pred_fallthru
      _
    // Predicated region
    $region14: #{tpu_custom_call.1} parent=1 // pred_check
      _
    $region15: #{tpu_custom_call.1} parent=1 // pred_check_branch
      %17 = sbr.rel (0) target = $region17
    $region16: #{tpu_custom_call.1} parent=1 // pred_region
      _
    $region17: #{tpu_custom_call.1} parent=1 // pred_fallthru
      _
    %v18 = vld [vmem:[%s0] sm:$0xff]
    %v19 = vld [vmem:[%s1] sm:$0xff]
    %v20 = vld [vmem:[%s2] sm:$0xff]
    %v21 = vld [vmem:[%s2 + $0x8] sm:$0xff]
    %v22 = vld [vmem:[%s2 + $0x10] sm:$0xff]
    %v23 = vld [vmem:[%s3] sm:$0x1]
    %v24 = vlaneseq
    %v25 = vshrl.u32 %v24, 7
    %v26 = vsub.s32 0, %v25
    %v27 = vrot.slane %v23, %v26
    %vm28 = vcmask 195584
    %v30 = vsel %vm28, %v18, 0
    %32 = vmatprep.subr.mxu0 0.0
    %33 = vmatpush1.msra.mxu0 %v20
    %34 = vmatprep.subr.mxu0 0.0
    %35 = vmatpush1.msra.mxu0 %v21
    %36 = vmatprep.subr.mxu0 0.0
    %37 = vmatpush1.msra.mxu0 %v22
    %38 = vmatprep.subr.mxu0 0.0
    %39 = vmatpush1.msra.mxu0 0.0
    %40 = vmatprep.subr.mxu0 0.0
    %41 = vmatpush1.msra.mxu0 0.0
    %42 = vmatprep.subr.mxu0 0.0
    %43 = vmatpush1.msra.mxu0 0.0
    %44 = vmatprep.subr.mxu0 0.0
    %45 = vmatpush1.msra.mxu0 0.0
    %46 = vmatprep.subr.mxu0 0.0
    %47 = vmatpush1.msra.mxu0 0.0
    %48 = vmatprep.subr.mxu0 0.0
    %49 = vmatpush1.msra.mxu0 0.0
    %50 = vmatprep.subr.mxu0 0.0
    %51 = vmatpush1.msra.mxu0 0.0
    %52 = vmatprep.subr.mxu0 0.0
    %53 = vmatpush1.msra.mxu0 0.0
    %54 = vmatprep.subr.mxu0 0.0
    %55 = vmatpush1.msra.mxu0 0.0
    %56 = vmatprep.subr.mxu0 0.0
    %57 = vmatpush1.msra.mxu0 0.0
    %58 = vmatprep.subr.mxu0 0.0
    %59 = vmatpush1.msra.mxu0 0.0
    %60 = vmatprep.subr.mxu0 0.0
    %61 = vmatpush1.msra.mxu0 0.0
    %62 = vmatprep.subr.mxu0 0.0
    %63 = vmatpush1.msra.mxu0 0.0
    %64 = vmatprep.subr.mxu0 0.0
    %65 = vmatpush1.msra.mxu0 0.0
    %66 = vmatprep.subr.mxu0 0.0
    %67 = vmatpush1.msra.mxu0 0.0
    %68 = vmatprep.subr.mxu0 0.0
    %69 = vmatpush1.msra.mxu0 0.0
    %70 = vmatprep.subr.mxu0 0.0
    %71 = vmatpush1.msra.mxu0 0.0
    %72 = vmatprep.subr.mxu0 0.0
    %73 = vmatpush1.msra.mxu0 0.0
    %74 = vmatprep.subr.mxu0 0.0
    %75 = vmatpush1.msra.mxu0 0.0
    %76 = vmatprep.subr.mxu0 0.0
    %77 = vmatpush1.msra.mxu0 0.0
    %78 = vmatprep.subr.mxu0 0.0
    %79 = vmatpush1.msra.mxu0 0.0
    %80 = vmatprep.subr.mxu0 0.0
    %81 = vmatpush1.msra.mxu0 0.0
    %82 = vmatprep.subr.mxu0 0.0
    %83 = vmatpush1.msra.mxu0 0.0
    %84 = vmatprep.subr.mxu0 0.0
    %85 = vmatpush1.msra.mxu0 0.0
    %86 = vmatprep.subr.mxu0 0.0
    %87 = vmatpush1.msra.mxu0 0.0
    %88 = vmatprep.subr.mxu0 0.0
    %89 = vmatpush1.msra.mxu0 0.0
    %90 = vmatprep.subr.mxu0 0.0
    %91 = vmatpush1.msra.mxu0 0.0
    %92 = vmatprep.subr.mxu0 0.0
    %93 = vmatpush1.msra.mxu0 0.0
    %94 = vmatprep.subr.mxu0 0.0
    %95 = vmatpush1.msra.mxu0 0.0
    %96 = vmatprep.mubr.f32.mxu0 0.0
    %97 = vmatmul.mubr.f32.gmra.mrb[0].mxu0 %v30
    %v98 = vpop.f32.mrb[0].mxu0
    %v99 = vadd.f32 %v27, %v98
    %v100 = vpop.f32.mrb[0].mxu0
    %101 = vdwg.mxu0
    %vm102 = vcmp.gt.f32.partialorder %v99, 0.0
    %v103 = vmul.f32 %v99, 0.01
    %v104 = vsel %vm102, %v99, %v103
    %vm105 = vcmask 261120
    %v106 = vsel %vm105, %v104, 0.0
    %107 = vadd.xlane.f32.xlu0 %v106
    %v108 = vpop.xlane.xlu0 %107
    %v109 = vrcp.pop 32.0
    %v110 = vmul.f32 %v108, %v109
    %v111 = vsub.f32 %v104, %v110
    %v112 = vmul.f32 %v111, %v111
    %v113 = vsel %vm105, %v112, 0.0
    %114 = vadd.xlane.f32.xlu0 %v113
    %v115 = vpop.xlane.xlu0 %114
    %v116 = vmul.f32 %v115, %v109
    %v117 = vadd.f32 %v116, 1e-05
    %v118 = vrsqrt.pop %v117
    %v119 = vmul.f32 %v111, %v118
    %v120 = vld [vmem:[%s3 + $0x1] sm:$0x1]
    %v121 = vlaneseq
    %v122 = vshrl.u32 %v121, 7
    %v123 = vsub.s32 0, %v122
    %v124 = vrot.slane %v120, %v123
    %v125 = vmul.f32 %v119, %v124
    %v126 = vld [vmem:[%s3 + $0x2] sm:$0x1]
    %v127 = vlaneseq
    %v128 = vshrl.u32 %v127, 7
    %v129 = vsub.s32 0, %v128
    %v130 = vrot.slane %v126, %v129
    %v131 = vadd.f32 %v125, %v130
    %v132 = vld [vmem:[%s2 + $0x18] sm:$0xff]
    %v133 = vld [vmem:[%s2 + $0x20] sm:$0xff]
    %v134 = vld [vmem:[%s2 + $0x28] sm:$0xff]
    %v135 = vld [vmem:[%s2 + $0x30] sm:$0xff]
    %v136 = vld [vmem:[%s2 + $0x38] sm:$0xff]
    %v137 = vld [vmem:[%s2 + $0x40] sm:$0xff]
    %v138 = vld [vmem:[%s2 + $0x48] sm:$0xff]
    %v140 = vsel %vm105, %v131, 0
    %142 = vmatprep.subr.mxu0 0.0
    %143 = vmatpush1.msra.mxu0 %v135
    %144 = vmatprep.subr.mxu0 0.0
    %145 = vmatpush1.msra.mxu0 %v136
    %146 = vmatprep.subr.mxu0 0.0
    %147 = vmatpush1.msra.mxu0 %v137
    %148 = vmatprep.subr.mxu0 0.0
    %149 = vmatpush1.msra.mxu0 %v138
    %150 = vmatprep.subr.mxu0 0.0
    %151 = vmatpush1.msra.mxu0 0.0
    %152 = vmatprep.subr.mxu0 0.0
    %153 = vmatpush1.msra.mxu0 0.0
    %154 = vmatprep.subr.mxu0 0.0
    %155 = vmatpush1.msra.mxu0 0.0
    %156 = vmatprep.subr.mxu0 0.0
    %157 = vmatpush1.msra.mxu0 0.0
    %158 = vmatprep.subr.mxu0 0.0
    %159 = vmatpush1.msra.mxu0 0.0
    %160 = vmatprep.subr.mxu0 0.0
    %161 = vmatpush1.msra.mxu0 0.0
    %162 = vmatprep.subr.mxu0 0.0
    %163 = vmatpush1.msra.mxu0 0.0
    %164 = vmatprep.subr.mxu0 0.0
    %165 = vmatpush1.msra.mxu0 0.0
    %166 = vmatprep.subr.mxu0 0.0
    %167 = vmatpush1.msra.mxu0 0.0
    %168 = vmatprep.subr.mxu0 0.0
    %169 = vmatpush1.msra.mxu0 0.0
    %170 = vmatprep.subr.mxu0 0.0
    %171 = vmatpush1.msra.mxu0 0.0
    %172 = vmatprep.subr.mxu0 0.0
    %173 = vmatpush1.msra.mxu0 0.0
    %174 = vmatprep.subr.mxu0 0.0
    %175 = vmatpush1.msra.mxu0 0.0
    %176 = vmatprep.subr.mxu0 0.0
    %177 = vmatpush1.msra.mxu0 0.0
    %178 = vmatprep.subr.mxu0 0.0
    %179 = vmatpush1.msra.mxu0 0.0
    %180 = vmatprep.subr.mxu0 0.0
    %181 = vmatpush1.msra.mxu0 0.0
    %182 = vmatprep.subr.mxu0 0.0
    %183 = vmatpush1.msra.mxu0 0.0
    %184 = vmatprep.subr.mxu0 0.0
    %185 = vmatpush1.msra.mxu0 0.0
    %186 = vmatprep.subr.mxu0 0.0
    %187 = vmatpush1.msra.mxu0 0.0
    %188 = vmatprep.subr.mxu0 0.0
    %189 = vmatpush1.msra.mxu0 0.0
    %190 = vmatprep.subr.mxu0 0.0
    %191 = vmatpush1.msra.mxu0 0.0
    %192 = vmatprep.subr.mxu0 0.0
    %193 = vmatpush1.msra.mxu0 0.0
    %194 = vmatprep.subr.mxu0 0.0
    %195 = vmatpush1.msra.mxu0 0.0
    %196 = vmatprep.subr.mxu0 0.0
    %197 = vmatpush1.msra.mxu0 0.0
    %198 = vmatprep.subr.mxu0 0.0
    %199 = vmatpush1.msra.mxu0 0.0
    %200 = vmatprep.subr.mxu0 0.0
    %201 = vmatpush1.msra.mxu0 0.0
    %202 = vmatprep.subr.mxu0 0.0
    %203 = vmatpush1.msra.mxu0 0.0
    %204 = vmatprep.subr.mxu0 0.0
    %205 = vmatpush1.msra.mxu0 0.0
    %206 = vmatprep.mubr.f32.mxu0 0.0
    %207 = vmatmul.mubr.f32.gmra.mrb[0].mxu0 %v140
    %v208 = vpop.f32.mrb[0].mxu0
    %v209 = vadd.f32 0.0, %v208
    %v210 = vpop.f32.mrb[0].mxu0
    %211 = vdwg.mxu0
    %212 = vmatprep.subr.mxu0 0.0
    %213 = vmatpush1.msra.mxu0 %v132
    %214 = vmatprep.subr.mxu0 0.0
    %215 = vmatpush1.msra.mxu0 %v133
    %216 = vmatprep.subr.mxu0 0.0
    %217 = vmatpush1.msra.mxu0 %v134
    %218 = vmatprep.subr.mxu0 0.0
    %219 = vmatpush1.msra.mxu0 0.0
    %220 = vmatprep.subr.mxu0 0.0
    %221 = vmatpush1.msra.mxu0 0.0
    %222 = vmatprep.subr.mxu0 0.0
    %223 = vmatpush1.msra.mxu0 0.0
    %224 = vmatprep.subr.mxu0 0.0
    %225 = vmatpush1.msra.mxu0 0.0
    %226 = vmatprep.subr.mxu0 0.0
    %227 = vmatpush1.msra.mxu0 0.0
    %228 = vmatprep.subr.mxu0 0.0
    %229 = vmatpush1.msra.mxu0 0.0
    %230 = vmatprep.subr.mxu0 0.0
    %231 = vmatpush1.msra.mxu0 0.0
    %232 = vmatprep.subr.mxu0 0.0
    %233 = vmatpush1.msra.mxu0 0.0
    %234 = vmatprep.subr.mxu0 0.0
    %235 = vmatpush1.msra.mxu0 0.0
    %236 = vmatprep.subr.mxu0 0.0
    %237 = vmatpush1.msra.mxu0 0.0
    %238 = vmatprep.subr.mxu0 0.0
    %239 = vmatpush1.msra.mxu0 0.0
    %240 = vmatprep.subr.mxu0 0.0
    %241 = vmatpush1.msra.mxu0 0.0
    %242 = vmatprep.subr.mxu0 0.0
    %243 = vmatpush1.msra.mxu0 0.0
    %244 = vmatprep.subr.mxu0 0.0
    %245 = vmatpush1.msra.mxu0 0.0
    %246 = vmatprep.subr.mxu0 0.0
    %247 = vmatpush1.msra.mxu0 0.0
    %248 = vmatprep.subr.mxu0 0.0
    %249 = vmatpush1.msra.mxu0 0.0
    %250 = vmatprep.subr.mxu0 0.0
    %251 = vmatpush1.msra.mxu0 0.0
    %252 = vmatprep.subr.mxu0 0.0
    %253 = vmatpush1.msra.mxu0 0.0
    %254 = vmatprep.subr.mxu0 0.0
    %255 = vmatpush1.msra.mxu0 0.0
    %256 = vmatprep.subr.mxu0 0.0
    %257 = vmatpush1.msra.mxu0 0.0
    %258 = vmatprep.subr.mxu0 0.0
    %259 = vmatpush1.msra.mxu0 0.0
    %260 = vmatprep.subr.mxu0 0.0
    %261 = vmatpush1.msra.mxu0 0.0
    %262 = vmatprep.subr.mxu0 0.0
    %263 = vmatpush1.msra.mxu0 0.0
    %264 = vmatprep.subr.mxu0 0.0
    %265 = vmatpush1.msra.mxu0 0.0
    %266 = vmatprep.subr.mxu0 0.0
    %267 = vmatpush1.msra.mxu0 0.0
    %268 = vmatprep.subr.mxu0 0.0
    %269 = vmatpush1.msra.mxu0 0.0
    %270 = vmatprep.subr.mxu0 0.0
    %271 = vmatpush1.msra.mxu0 0.0
    %272 = vmatprep.subr.mxu0 0.0
    %273 = vmatpush1.msra.mxu0 0.0
    %274 = vmatprep.subr.mxu0 0.0
    %275 = vmatpush1.msra.mxu0 0.0
    %276 = vmatprep.mubr.f32.mxu0 0.0
    %277 = vmatmul.mubr.f32.gmra.mrb[0].mxu0 %v30
    %v278 = vpop.f32.mrb[0].mxu0
    %v279 = vadd.f32 %v209, %v278
    %v280 = vpop.f32.mrb[0].mxu0
    %281 = vdwg.mxu0
    %v282 = vld [vmem:[%s3 + $0x3] sm:$0x1]
    %v283 = vlaneseq
    %v284 = vshrl.u32 %v283, 7
    %v285 = vsub.s32 0, %v284
    %v286 = vrot.slane %v282, %v285
    %v287 = vadd.f32 %v279, %v286
    %vm288 = vcmp.gt.f32.partialorder %v287, 0.0
    %v289 = vmul.f32 %v287, 0.01
    %v290 = vsel %vm288, %v287, %v289
    %v291 = vsel %vm105, %v290, 0.0
    %292 = vadd.xlane.f32.xlu0 %v291
    %v293 = vpop.xlane.xlu0 %292
    %v294 = vmul.f32 %v293, %v109
    %v295 = vsub.f32 %v290, %v294
    %v296 = vmul.f32 %v295, %v295
    %v297 = vsel %vm105, %v296, 0.0
    %298 = vadd.xlane.f32.xlu0 %v297
    %v299 = vpop.xlane.xlu0 %298
    %v300 = vmul.f32 %v299, %v109
    %v301 = vadd.f32 %v300, 1e-05
    %v302 = vrsqrt.pop %v301
    %v303 = vmul.f32 %v295, %v302
    %v304 = vld [vmem:[%s3 + $0x4] sm:$0x1]
    %v305 = vlaneseq
    %v306 = vshrl.u32 %v305, 7
    %v307 = vsub.s32 0, %v306
    %v308 = vrot.slane %v304, %v307
    %v309 = vmul.f32 %v303, %v308
    %v310 = vld [vmem:[%s3 + $0x5] sm:$0x1]
    %v311 = vlaneseq
    %v312 = vshrl.u32 %v311, 7
    %v313 = vsub.s32 0, %v312
    %v314 = vrot.slane %v310, %v313
    %v315 = vadd.f32 %v309, %v314
    %v316 = vld [vmem:[%s2 + $0x50] sm:$0xff]
    %v317 = vld [vmem:[%s2 + $0x58] sm:$0xff]
    %v318 = vld [vmem:[%s2 + $0x60] sm:$0xff]
    %v319 = vld [vmem:[%s2 + $0x68] sm:$0xff]
    %v320 = vld [vmem:[%s2 + $0x70] sm:$0xff]
    %v321 = vld [vmem:[%s2 + $0x78] sm:$0xff]
    %v322 = vld [vmem:[%s2 + $0x80] sm:$0xff]
    %v323 = vld [vmem:[%s2 + $0x88] sm:$0xff]
    %v325 = vsel %vm105, %v315, 0
    %327 = vmatprep.subr.mxu0 0.0
    %328 = vmatpush1.msra.mxu0 %v320
    %329 = vmatprep.subr.mxu0 0.0
    %330 = vmatpush1.msra.mxu0 %v321
    %331 = vmatprep.subr.mxu0 0.0
    %332 = vmatpush1.msra.mxu0 %v322
    %333 = vmatprep.subr.mxu0 0.0
    %334 = vmatpush1.msra.mxu0 %v323
    %335 = vmatprep.subr.mxu0 0.0
    %336 = vmatpush1.msra.mxu0 0.0
    %337 = vmatprep.subr.mxu0 0.0
    %338 = vmatpush1.msra.mxu0 0.0
    %339 = vmatprep.subr.mxu0 0.0
    %340 = vmatpush1.msra.mxu0 0.0
    %341 = vmatprep.subr.mxu0 0.0
    %342 = vmatpush1.msra.mxu0 0.0
    %343 = vmatprep.subr.mxu0 0.0
    %344 = vmatpush1.msra.mxu0 0.0
    %345 = vmatprep.subr.mxu0 0.0
    %346 = vmatpush1.msra.mxu0 0.0
    %347 = vmatprep.subr.mxu0 0.0
    %348 = vmatpush1.msra.mxu0 0.0
    %349 = vmatprep.subr.mxu0 0.0
    %350 = vmatpush1.msra.mxu0 0.0
    %351 = vmatprep.subr.mxu0 0.0
    %352 = vmatpush1.msra.mxu0 0.0
    %353 = vmatprep.subr.mxu0 0.0
    %354 = vmatpush1.msra.mxu0 0.0
    %355 = vmatprep.subr.mxu0 0.0
    %356 = vmatpush1.msra.mxu0 0.0
    %357 = vmatprep.subr.mxu0 0.0
    %358 = vmatpush1.msra.mxu0 0.0
    %359 = vmatprep.subr.mxu0 0.0
    %360 = vmatpush1.msra.mxu0 0.0
    %361 = vmatprep.subr.mxu0 0.0
    %362 = vmatpush1.msra.mxu0 0.0
    %363 = vmatprep.subr.mxu0 0.0
    %364 = vmatpush1.msra.mxu0 0.0
    %365 = vmatprep.subr.mxu0 0.0
    %366 = vmatpush1.msra.mxu0 0.0
    %367 = vmatprep.subr.mxu0 0.0
    %368 = vmatpush1.msra.mxu0 0.0
    %369 = vmatprep.subr.mxu0 0.0
    %370 = vmatpush1.msra.mxu0 0.0
    %371 = vmatprep.subr.mxu0 0.0
    %372 = vmatpush1.msra.mxu0 0.0
    %373 = vmatprep.subr.mxu0 0.0
    %374 = vmatpush1.msra.mxu0 0.0
    %375 = vmatprep.subr.mxu0 0.0
    %376 = vmatpush1.msra.mxu0 0.0
    %377 = vmatprep.subr.mxu0 0.0
    %378 = vmatpush1.msra.mxu0 0.0
    %379 = vmatprep.subr.mxu0 0.0
    %380 = vmatpush1.msra.mxu0 0.0
    %381 = vmatprep.subr.mxu0 0.0
    %382 = vmatpush1.msra.mxu0 0.0
    %383 = vmatprep.subr.mxu0 0.0
    %384 = vmatpush1.msra.mxu0 0.0
    %385 = vmatprep.subr.mxu0 0.0
    %386 = vmatpush1.msra.mxu0 0.0
    %387 = vmatprep.subr.mxu0 0.0
    %388 = vmatpush1.msra.mxu0 0.0
    %389 = vmatprep.subr.mxu0 0.0
    %390 = vmatpush1.msra.mxu0 0.0
    %391 = vmatprep.mubr.f32.mxu0 0.0
    %392 = vmatmul.mubr.f32.gmra.mrb[0].mxu0 %v325
    %v393 = vpop.f32.mrb[0].mxu0
    %v394 = vadd.f32 0.0, %v393
    %v395 = vpop.f32.mrb[0].mxu0
    %396 = vdwg.mxu0
    %397 = vmatprep.subr.mxu0 0.0
    %398 = vmatpush1.msra.mxu0 %v316
    %399 = vmatprep.subr.mxu0 0.0
    %400 = vmatpush1.msra.mxu0 %v317
    %401 = vmatprep.subr.mxu0 0.0
    %402 = vmatpush1.msra.mxu0 %v318
    %403 = vmatprep.subr.mxu0 0.0
    %404 = vmatpush1.msra.mxu0 %v319
    %405 = vmatprep.subr.mxu0 0.0
    %406 = vmatpush1.msra.mxu0 0.0
    %407 = vmatprep.subr.mxu0 0.0
    %408 = vmatpush1.msra.mxu0 0.0
    %409 = vmatprep.subr.mxu0 0.0
    %410 = vmatpush1.msra.mxu0 0.0
    %411 = vmatprep.subr.mxu0 0.0
    %412 = vmatpush1.msra.mxu0 0.0
    %413 = vmatprep.subr.mxu0 0.0
    %414 = vmatpush1.msra.mxu0 0.0
    %415 = vmatprep.subr.mxu0 0.0
    %416 = vmatpush1.msra.mxu0 0.0
    %417 = vmatprep.subr.mxu0 0.0
    %418 = vmatpush1.msra.mxu0 0.0
    %419 = vmatprep.subr.mxu0 0.0
    %420 = vmatpush1.msra.mxu0 0.0
    %421 = vmatprep.subr.mxu0 0.0
    %422 = vmatpush1.msra.mxu0 0.0
    %423 = vmatprep.subr.mxu0 0.0
    %424 = vmatpush1.msra.mxu0 0.0
    %425 = vmatprep.subr.mxu0 0.0
    %426 = vmatpush1.msra.mxu0 0.0
    %427 = vmatprep.subr.mxu0 0.0
    %428 = vmatpush1.msra.mxu0 0.0
    %429 = vmatprep.subr.mxu0 0.0
    %430 = vmatpush1.msra.mxu0 0.0
    %431 = vmatprep.subr.mxu0 0.0
    %432 = vmatpush1.msra.mxu0 0.0
    %433 = vmatprep.subr.mxu0 0.0
    %434 = vmatpush1.msra.mxu0 0.0
    %435 = vmatprep.subr.mxu0 0.0
    %436 = vmatpush1.msra.mxu0 0.0
    %437 = vmatprep.subr.mxu0 0.0
    %438 = vmatpush1.msra.mxu0 0.0
    %439 = vmatprep.subr.mxu0 0.0
    %440 = vmatpush1.msra.mxu0 0.0
    %441 = vmatprep.subr.mxu0 0.0
    %442 = vmatpush1.msra.mxu0 0.0
    %443 = vmatprep.subr.mxu0 0.0
    %444 = vmatpush1.msra.mxu0 0.0
    %445 = vmatprep.subr.mxu0 0.0
    %446 = vmatpush1.msra.mxu0 0.0
    %447 = vmatprep.subr.mxu0 0.0
    %448 = vmatpush1.msra.mxu0 0.0
    %449 = vmatprep.subr.mxu0 0.0
    %450 = vmatpush1.msra.mxu0 0.0
    %451 = vmatprep.subr.mxu0 0.0
    %452 = vmatpush1.msra.mxu0 0.0
    %453 = vmatprep.subr.mxu0 0.0
    %454 = vmatpush1.msra.mxu0 0.0
    %455 = vmatprep.subr.mxu0 0.0
    %456 = vmatpush1.msra.mxu0 0.0
    %457 = vmatprep.subr.mxu0 0.0
    %458 = vmatpush1.msra.mxu0 0.0
    %459 = vmatprep.subr.mxu0 0.0
    %460 = vmatpush1.msra.mxu0 0.0
    %461 = vmatprep.mubr.f32.mxu0 0.0
    %462 = vmatmul.mubr.f32.gmra.mrb[0].mxu0 %v140
    %v463 = vpop.f32.mrb[0].mxu0
    %v464 = vadd.f32 %v394, %v463
    %v465 = vpop.f32.mrb[0].mxu0
    %466 = vdwg.mxu0
    %v467 = vld [vmem:[%s3 + $0x6] sm:$0x1]
    %v468 = vlaneseq
    %v469 = vshrl.u32 %v468, 7
    %v470 = vsub.s32 0, %v469
    %v471 = vrot.slane %v467, %v470
    %v472 = vadd.f32 %v464, %v471
    %vm473 = vcmp.gt.f32.partialorder %v472, 0.0
    %v474 = vmul.f32 %v472, 0.01
    %v475 = vsel %vm473, %v472, %v474
    %v476 = vsel %vm105, %v475, 0.0
    %477 = vadd.xlane.f32.xlu0 %v476
    %v478 = vpop.xlane.xlu0 %477
    %v479 = vmul.f32 %v478, %v109
    %v480 = vsub.f32 %v475, %v479
    %v481 = vmul.f32 %v480, %v480
    %v482 = vsel %vm105, %v481, 0.0
    %483 = vadd.xlane.f32.xlu0 %v482
    %v484 = vpop.xlane.xlu0 %483
    %v485 = vmul.f32 %v484, %v109
    %v486 = vadd.f32 %v485, 1e-05
    %v487 = vrsqrt.pop %v486
    %v488 = vmul.f32 %v480, %v487
    %v489 = vld [vmem:[%s3 + $0x7] sm:$0x1]
    %v490 = vlaneseq
    %v491 = vshrl.u32 %v490, 7
    %v492 = vsub.s32 0, %v491
    %v493 = vrot.slane %v489, %v492
    %v494 = vmul.f32 %v488, %v493
    %v495 = vld [vmem:[%s3 + $0x8] sm:$0x1]
    %v496 = vlaneseq
    %v497 = vshrl.u32 %v496, 7
    %v498 = vsub.s32 0, %v497
    %v499 = vrot.slane %v495, %v498
    %v500 = vadd.f32 %v494, %v499
    %v501 = vld [vmem:[%s2 + $0x90] sm:$0x3f]
    %v502 = vld [vmem:[%s2 + $0x98] sm:$0xff]
    %v503 = vld [vmem:[%s2 + $0xa0] sm:$0xff]
    %v504 = vld [vmem:[%s2 + $0xa8] sm:$0xff]
    %v505 = vld [vmem:[%s2 + $0xb0] sm:$0xff]
    %v507 = vsel %vm105, %v500, 0
    %509 = vmatprep.subr.mxu0 0.0
    %510 = vmatpush1.msra.mxu0 %v502
    %511 = vmatprep.subr.mxu0 0.0
    %512 = vmatpush1.msra.mxu0 %v503
    %513 = vmatprep.subr.mxu0 0.0
    %514 = vmatpush1.msra.mxu0 %v504
    %515 = vmatprep.subr.mxu0 0.0
    %516 = vmatpush1.msra.mxu0 %v505
    %517 = vmatprep.subr.mxu0 0.0
    %518 = vmatpush1.msra.mxu0 0.0
    %519 = vmatprep.subr.mxu0 0.0
    %520 = vmatpush1.msra.mxu0 0.0
    %521 = vmatprep.subr.mxu0 0.0
    %522 = vmatpush1.msra.mxu0 0.0
    %523 = vmatprep.subr.mxu0 0.0
    %524 = vmatpush1.msra.mxu0 0.0
    %525 = vmatprep.subr.mxu0 0.0
    %526 = vmatpush1.msra.mxu0 0.0
    %527 = vmatprep.subr.mxu0 0.0
    %528 = vmatpush1.msra.mxu0 0.0
    %529 = vmatprep.subr.mxu0 0.0
    %530 = vmatpush1.msra.mxu0 0.0
    %531 = vmatprep.subr.mxu0 0.0
    %532 = vmatpush1.msra.mxu0 0.0
    %533 = vmatprep.subr.mxu0 0.0
    %534 = vmatpush1.msra.mxu0 0.0
    %535 = vmatprep.subr.mxu0 0.0
    %536 = vmatpush1.msra.mxu0 0.0
    %537 = vmatprep.subr.mxu0 0.0
    %538 = vmatpush1.msra.mxu0 0.0
    %539 = vmatprep.subr.mxu0 0.0
    %540 = vmatpush1.msra.mxu0 0.0
    %541 = vmatprep.subr.mxu0 0.0
    %542 = vmatpush1.msra.mxu0 0.0
    %543 = vmatprep.subr.mxu0 0.0
    %544 = vmatpush1.msra.mxu0 0.0
    %545 = vmatprep.subr.mxu0 0.0
    %546 = vmatpush1.msra.mxu0 0.0
    %547 = vmatprep.subr.mxu0 0.0
    %548 = vmatpush1.msra.mxu0 0.0
    %549 = vmatprep.subr.mxu0 0.0
    %550 = vmatpush1.msra.mxu0 0.0
    %551 = vmatprep.subr.mxu0 0.0
    %552 = vmatpush1.msra.mxu0 0.0
    %553 = vmatprep.subr.mxu0 0.0
    %554 = vmatpush1.msra.mxu0 0.0
    %555 = vmatprep.subr.mxu0 0.0
    %556 = vmatpush1.msra.mxu0 0.0
    %557 = vmatprep.subr.mxu0 0.0
    %558 = vmatpush1.msra.mxu0 0.0
    %559 = vmatprep.subr.mxu0 0.0
    %560 = vmatpush1.msra.mxu0 0.0
    %561 = vmatprep.subr.mxu0 0.0
    %562 = vmatpush1.msra.mxu0 0.0
    %563 = vmatprep.subr.mxu0 0.0
    %564 = vmatpush1.msra.mxu0 0.0
    %565 = vmatprep.subr.mxu0 0.0
    %566 = vmatpush1.msra.mxu0 0.0
    %567 = vmatprep.subr.mxu0 0.0
    %568 = vmatpush1.msra.mxu0 0.0
    %569 = vmatprep.subr.mxu0 0.0
    %570 = vmatpush1.msra.mxu0 0.0
    %571 = vmatprep.subr.mxu0 0.0
    %572 = vmatpush1.msra.mxu0 0.0
    %573 = vmatprep.mubr.f32.mxu0 0.0
    %574 = vmatmul.mubr.f32.gmra.mrb[0].mxu0 %v507
    %v575 = vpop.f32.mrb[0].mxu0
    %v576 = vadd.f32 0.0, %v575
    %v577 = vpop.f32.mrb[0].mxu0
    %578 = vdwg.mxu0
    %vm579 = vcmask 48128
    %v581 = vsel %vm579, %v19, 0
    %vm583 = vcmask 1045504
    %v585 = vsel %vm583, %v501, 0
    %587 = vmatprep.subr.mxu0 0.0
    %588 = vmatpush1.msra.mxu0 %v585
    %589 = vmatprep.subr.mxu0 0.0
    %590 = vmatpush1.msra.mxu0 0.0
    %591 = vmatprep.subr.mxu0 0.0
    %592 = vmatpush1.msra.mxu0 0.0
    %593 = vmatprep.subr.mxu0 0.0
    %594 = vmatpush1.msra.mxu0 0.0
    %595 = vmatprep.subr.mxu0 0.0
    %596 = vmatpush1.msra.mxu0 0.0
    %597 = vmatprep.subr.mxu0 0.0
    %598 = vmatpush1.msra.mxu0 0.0
    %599 = vmatprep.subr.mxu0 0.0
    %600 = vmatpush1.msra.mxu0 0.0
    %601 = vmatprep.subr.mxu0 0.0
    %602 = vmatpush1.msra.mxu0 0.0
    %603 = vmatprep.subr.mxu0 0.0
    %604 = vmatpush1.msra.mxu0 0.0
    %605 = vmatprep.subr.mxu0 0.0
    %606 = vmatpush1.msra.mxu0 0.0
    %607 = vmatprep.subr.mxu0 0.0
    %608 = vmatpush1.msra.mxu0 0.0
    %609 = vmatprep.subr.mxu0 0.0
    %610 = vmatpush1.msra.mxu0 0.0
    %611 = vmatprep.subr.mxu0 0.0
    %612 = vmatpush1.msra.mxu0 0.0
    %613 = vmatprep.subr.mxu0 0.0
    %614 = vmatpush1.msra.mxu0 0.0
    %615 = vmatprep.subr.mxu0 0.0
    %616 = vmatpush1.msra.mxu0 0.0
    %617 = vmatprep.subr.mxu0 0.0
    %618 = vmatpush1.msra.mxu0 0.0
    %619 = vmatprep.subr.mxu0 0.0
    %620 = vmatpush1.msra.mxu0 0.0
    %621 = vmatprep.subr.mxu0 0.0
    %622 = vmatpush1.msra.mxu0 0.0
    %623 = vmatprep.subr.mxu0 0.0
    %624 = vmatpush1.msra.mxu0 0.0
    %625 = vmatprep.subr.mxu0 0.0
    %626 = vmatpush1.msra.mxu0 0.0
    %627 = vmatprep.subr.mxu0 0.0
    %628 = vmatpush1.msra.mxu0 0.0
    %629 = vmatprep.subr.mxu0 0.0
    %630 = vmatpush1.msra.mxu0 0.0
    %631 = vmatprep.subr.mxu0 0.0
    %632 = vmatpush1.msra.mxu0 0.0
    %633 = vmatprep.subr.mxu0 0.0
    %634 = vmatpush1.msra.mxu0 0.0
    %635 = vmatprep.subr.mxu0 0.0
    %636 = vmatpush1.msra.mxu0 0.0
    %637 = vmatprep.subr.mxu0 0.0
    %638 = vmatpush1.msra.mxu0 0.0
    %639 = vmatprep.subr.mxu0 0.0
    %640 = vmatpush1.msra.mxu0 0.0
    %641 = vmatprep.subr.mxu0 0.0
    %642 = vmatpush1.msra.mxu0 0.0
    %643 = vmatprep.subr.mxu0 0.0
    %644 = vmatpush1.msra.mxu0 0.0
    %645 = vmatprep.subr.mxu0 0.0
    %646 = vmatpush1.msra.mxu0 0.0
    %647 = vmatprep.subr.mxu0 0.0
    %648 = vmatpush1.msra.mxu0 0.0
    %649 = vmatprep.subr.mxu0 0.0
    %650 = vmatpush1.msra.mxu0 0.0
    %651 = vmatprep.mubr.f32.mxu0 0.0
    %652 = vmatmul.mubr.f32.gmra.mrb[0].mxu0 %v581
    %v653 = vpop.f32.mrb[0].mxu0
    %v654 = vadd.f32 %v576, %v653
    %v655 = vpop.f32.mrb[0].mxu0
    %656 = vdwg.mxu0
    %v657 = vld [vmem:[%s3 + $0x9] sm:$0x1]
    %v658 = vlaneseq
    %v659 = vshrl.u32 %v658, 7
    %v660 = vsub.s32 0, %v659
    %v661 = vrot.slane %v657, %v660
    %v662 = vadd.f32 %v654, %v661
    %vm663 = vcmp.gt.f32.partialorder %v662, 0.0
    %v664 = vmul.f32 %v662, 0.01
    %v665 = vsel %vm663, %v662, %v664
    %v666 = vsel %vm105, %v665, 0.0
    %667 = vadd.xlane.f32.xlu0 %v666
    %v668 = vpop.xlane.xlu0 %667
    %v669 = vmul.f32 %v668, %v109
    %v670 = vsub.f32 %v665, %v669
    %v671 = vmul.f32 %v670, %v670
    %v672 = vsel %vm105, %v671, 0.0
    %673 = vadd.xlane.f32.xlu0 %v672
    %v674 = vpop.xlane.xlu0 %673
    %v675 = vmul.f32 %v674, %v109
    %v676 = vadd.f32 %v675, 1e-05
    %v677 = vrsqrt.pop %v676
    %v678 = vmul.f32 %v670, %v677
    %v679 = vld [vmem:[%s3 + $0xa] sm:$0x1]
    %v680 = vlaneseq
    %v681 = vshrl.u32 %v680, 7
    %v682 = vsub.s32 0, %v681
    %v683 = vrot.slane %v679, %v682
    %v684 = vmul.f32 %v678, %v683
    %v685 = vld [vmem:[%s3 + $0xb] sm:$0x1]
    %v686 = vlaneseq
    %v687 = vshrl.u32 %v686, 7
    %v688 = vsub.s32 0, %v687
    %v689 = vrot.slane %v685, %v688
    %v690 = vadd.f32 %v684, %v689
    %v691 = vld [vmem:[%s2 + $0xb8] sm:$0x3f]
    %v692 = vld [vmem:[%s2 + $0xc0] sm:$0xff]
    %v693 = vld [vmem:[%s2 + $0xc8] sm:$0xff]
    %v694 = vld [vmem:[%s2 + $0xd0] sm:$0xff]
    %v695 = vld [vmem:[%s2 + $0xd8] sm:$0xff]
    %696 = vmatprep.subr.mxu0 0.0
    %697 = vmatpush1.msra.mxu0 %v692
    %698 = vmatprep.subr.mxu0 0.0
    %699 = vmatpush1.msra.mxu0 %v693
    %700 = vmatprep.subr.mxu0 0.0
    %701 = vmatpush1.msra.mxu0 %v694
    %702 = vmatprep.subr.mxu0 0.0
    %703 = vmatpush1.msra.mxu0 %v695
    %704 = vmatprep.subr.mxu0 0.0
    %705 = vmatpush1.msra.mxu0 0.0
    %706 = vmatprep.subr.mxu0 0.0
    %707 = vmatpush1.msra.mxu0 0.0
    %708 = vmatprep.subr.mxu0 0.0
    %709 = vmatpush1.msra.mxu0 0.0
    %710 = vmatprep.subr.mxu0 0.0
    %711 = vmatpush1.msra.mxu0 0.0
    %712 = vmatprep.subr.mxu0 0.0
    %713 = vmatpush1.msra.mxu0 0.0
    %714 = vmatprep.subr.mxu0 0.0
    %715 = vmatpush1.msra.mxu0 0.0
    %716 = vmatprep.subr.mxu0 0.0
    %717 = vmatpush1.msra.mxu0 0.0
    %718 = vmatprep.subr.mxu0 0.0
    %719 = vmatpush1.msra.mxu0 0.0
    %720 = vmatprep.subr.mxu0 0.0
    %721 = vmatpush1.msra.mxu0 0.0
    %722 = vmatprep.subr.mxu0 0.0
    %723 = vmatpush1.msra.mxu0 0.0
    %724 = vmatprep.subr.mxu0 0.0
    %725 = vmatpush1.msra.mxu0 0.0
    %726 = vmatprep.subr.mxu0 0.0
    %727 = vmatpush1.msra.mxu0 0.0
    %728 = vmatprep.subr.mxu0 0.0
    %729 = vmatpush1.msra.mxu0 0.0
    %730 = vmatprep.subr.mxu0 0.0
    %731 = vmatpush1.msra.mxu0 0.0
    %732 = vmatprep.subr.mxu0 0.0
    %733 = vmatpush1.msra.mxu0 0.0
    %734 = vmatprep.subr.mxu0 0.0
    %735 = vmatpush1.msra.mxu0 0.0
    %736 = vmatprep.subr.mxu0 0.0
    %737 = vmatpush1.msra.mxu0 0.0
    %738 = vmatprep.subr.mxu0 0.0
    %739 = vmatpush1.msra.mxu0 0.0
    %740 = vmatprep.subr.mxu0 0.0
    %741 = vmatpush1.msra.mxu0 0.0
    %742 = vmatprep.subr.mxu0 0.0
    %743 = vmatpush1.msra.mxu0 0.0
    %744 = vmatprep.subr.mxu0 0.0
    %745 = vmatpush1.msra.mxu0 0.0
    %746 = vmatprep.subr.mxu0 0.0
    %747 = vmatpush1.msra.mxu0 0.0
    %748 = vmatprep.subr.mxu0 0.0
    %749 = vmatpush1.msra.mxu0 0.0
    %750 = vmatprep.subr.mxu0 0.0
    %751 = vmatpush1.msra.mxu0 0.0
    %752 = vmatprep.subr.mxu0 0.0
    %753 = vmatpush1.msra.mxu0 0.0
    %754 = vmatprep.subr.mxu0 0.0
    %755 = vmatpush1.msra.mxu0 0.0
    %756 = vmatprep.subr.mxu0 0.0
    %757 = vmatpush1.msra.mxu0 0.0
    %758 = vmatprep.subr.mxu0 0.0
    %759 = vmatpush1.msra.mxu0 0.0
    %760 = vmatprep.mubr.f32.mxu0 0.0
    %761 = vmatmul.mubr.f32.gmra.mrb[0].mxu0 %v507
    %v762 = vpop.f32.mrb[0].mxu0
    %v763 = vadd.f32 0.0, %v762
    %v764 = vpop.f32.mrb[0].mxu0
    %765 = vdwg.mxu0
    %v767 = vsel %vm583, %v691, 0
    %769 = vmatprep.subr.mxu0 0.0
    %770 = vmatpush1.msra.mxu0 %v767
    %771 = vmatprep.subr.mxu0 0.0
    %772 = vmatpush1.msra.mxu0 0.0
    %773 = vmatprep.subr.mxu0 0.0
    %774 = vmatpush1.msra.mxu0 0.0
    %775 = vmatprep.subr.mxu0 0.0
    %776 = vmatpush1.msra.mxu0 0.0
    %777 = vmatprep.subr.mxu0 0.0
    %778 = vmatpush1.msra.mxu0 0.0
    %779 = vmatprep.subr.mxu0 0.0
    %780 = vmatpush1.msra.mxu0 0.0
    %781 = vmatprep.subr.mxu0 0.0
    %782 = vmatpush1.msra.mxu0 0.0
    %783 = vmatprep.subr.mxu0 0.0
    %784 = vmatpush1.msra.mxu0 0.0
    %785 = vmatprep.subr.mxu0 0.0
    %786 = vmatpush1.msra.mxu0 0.0
    %787 = vmatprep.subr.mxu0 0.0
    %788 = vmatpush1.msra.mxu0 0.0
    %789 = vmatprep.subr.mxu0 0.0
    %790 = vmatpush1.msra.mxu0 0.0
    %791 = vmatprep.subr.mxu0 0.0
    %792 = vmatpush1.msra.mxu0 0.0
    %793 = vmatprep.subr.mxu0 0.0
    %794 = vmatpush1.msra.mxu0 0.0
    %795 = vmatprep.subr.mxu0 0.0
    %796 = vmatpush1.msra.mxu0 0.0
    %797 = vmatprep.subr.mxu0 0.0
    %798 = vmatpush1.msra.mxu0 0.0
    %799 = vmatprep.subr.mxu0 0.0
    %800 = vmatpush1.msra.mxu0 0.0
    %801 = vmatprep.subr.mxu0 0.0
    %802 = vmatpush1.msra.mxu0 0.0
    %803 = vmatprep.subr.mxu0 0.0
    %804 = vmatpush1.msra.mxu0 0.0
    %805 = vmatprep.subr.mxu0 0.0
    %806 = vmatpush1.msra.mxu0 0.0
    %807 = vmatprep.subr.mxu0 0.0
    %808 = vmatpush1.msra.mxu0 0.0
    %809 = vmatprep.subr.mxu0 0.0
    %810 = vmatpush1.msra.mxu0 0.0
    %811 = vmatprep.subr.mxu0 0.0
    %812 = vmatpush1.msra.mxu0 0.0
    %813 = vmatprep.subr.mxu0 0.0
    %814 = vmatpush1.msra.mxu0 0.0
    %815 = vmatprep.subr.mxu0 0.0
    %816 = vmatpush1.msra.mxu0 0.0
    %817 = vmatprep.subr.mxu0 0.0
    %818 = vmatpush1.msra.mxu0 0.0
    %819 = vmatprep.subr.mxu0 0.0
    %820 = vmatpush1.msra.mxu0 0.0
    %821 = vmatprep.subr.mxu0 0.0
    %822 = vmatpush1.msra.mxu0 0.0
    %823 = vmatprep.subr.mxu0 0.0
    %824 = vmatpush1.msra.mxu0 0.0
    %825 = vmatprep.subr.mxu0 0.0
    %826 = vmatpush1.msra.mxu0 0.0
    %827 = vmatprep.subr.mxu0 0.0
    %828 = vmatpush1.msra.mxu0 0.0
    %829 = vmatprep.subr.mxu0 0.0
    %830 = vmatpush1.msra.mxu0 0.0
    %831 = vmatprep.subr.mxu0 0.0
    %832 = vmatpush1.msra.mxu0 0.0
    %833 = vmatprep.mubr.f32.mxu0 0.0
    %834 = vmatmul.mubr.f32.gmra.mrb[0].mxu0 %v581
    %v835 = vpop.f32.mrb[0].mxu0
    %v836 = vadd.f32 %v763, %v835
    %v837 = vpop.f32.mrb[0].mxu0
    %838 = vdwg.mxu0
    %v839 = vld [vmem:[%s2 + $0xe0] sm:$0xff]
    %v840 = vld [vmem:[%s2 + $0xe8] sm:$0xff]
    %v841 = vld [vmem:[%s2 + $0xf0] sm:$0xff]
    %v842 = vld [vmem:[%s2 + $0xf8] sm:$0xff]
    %v844 = vsel %vm105, %v690, 0
    %846 = vmatprep.subr.mxu0 0.0
    %847 = vmatpush1.msra.mxu0 %v839
    %848 = vmatprep.subr.mxu0 0.0
    %849 = vmatpush1.msra.mxu0 %v840
    %850 = vmatprep.subr.mxu0 0.0
    %851 = vmatpush1.msra.mxu0 %v841
    %852 = vmatprep.subr.mxu0 0.0
    %853 = vmatpush1.msra.mxu0 %v842
    %854 = vmatprep.subr.mxu0 0.0
    %855 = vmatpush1.msra.mxu0 0.0
    %856 = vmatprep.subr.mxu0 0.0
    %857 = vmatpush1.msra.mxu0 0.0
    %858 = vmatprep.subr.mxu0 0.0
    %859 = vmatpush1.msra.mxu0 0.0
    %860 = vmatprep.subr.mxu0 0.0
    %861 = vmatpush1.msra.mxu0 0.0
    %862 = vmatprep.subr.mxu0 0.0
    %863 = vmatpush1.msra.mxu0 0.0
    %864 = vmatprep.subr.mxu0 0.0
    %865 = vmatpush1.msra.mxu0 0.0
    %866 = vmatprep.subr.mxu0 0.0
    %867 = vmatpush1.msra.mxu0 0.0
    %868 = vmatprep.subr.mxu0 0.0
    %869 = vmatpush1.msra.mxu0 0.0
    %870 = vmatprep.subr.mxu0 0.0
    %871 = vmatpush1.msra.mxu0 0.0
    %872 = vmatprep.subr.mxu0 0.0
    %873 = vmatpush1.msra.mxu0 0.0
    %874 = vmatprep.subr.mxu0 0.0
    %875 = vmatpush1.msra.mxu0 0.0
    %876 = vmatprep.subr.mxu0 0.0
    %877 = vmatpush1.msra.mxu0 0.0
    %878 = vmatprep.subr.mxu0 0.0
    %879 = vmatpush1.msra.mxu0 0.0
    %880 = vmatprep.subr.mxu0 0.0
    %881 = vmatpush1.msra.mxu0 0.0
    %882 = vmatprep.subr.mxu0 0.0
    %883 = vmatpush1.msra.mxu0 0.0
    %884 = vmatprep.subr.mxu0 0.0
    %885 = vmatpush1.msra.mxu0 0.0
    %886 = vmatprep.subr.mxu0 0.0
    %887 = vmatpush1.msra.mxu0 0.0
    %888 = vmatprep.subr.mxu0 0.0
    %889 = vmatpush1.msra.mxu0 0.0
    %890 = vmatprep.subr.mxu0 0.0
    %891 = vmatpush1.msra.mxu0 0.0
    %892 = vmatprep.subr.mxu0 0.0
    %893 = vmatpush1.msra.mxu0 0.0
    %894 = vmatprep.subr.mxu0 0.0
    %895 = vmatpush1.msra.mxu0 0.0
    %896 = vmatprep.subr.mxu0 0.0
    %897 = vmatpush1.msra.mxu0 0.0
    %898 = vmatprep.subr.mxu0 0.0
    %899 = vmatpush1.msra.mxu0 0.0
    %900 = vmatprep.subr.mxu0 0.0
    %901 = vmatpush1.msra.mxu0 0.0
    %902 = vmatprep.subr.mxu0 0.0
    %903 = vmatpush1.msra.mxu0 0.0
    %904 = vmatprep.subr.mxu0 0.0
    %905 = vmatpush1.msra.mxu0 0.0
    %906 = vmatprep.subr.mxu0 0.0
    %907 = vmatpush1.msra.mxu0 0.0
    %908 = vmatprep.subr.mxu0 0.0
    %909 = vmatpush1.msra.mxu0 0.0
    %910 = vmatprep.mubr.f32.mxu0 0.0
    %911 = vmatmul.mubr.f32.gmra.mrb[0].mxu0 %v844
    %v912 = vpop.f32.mrb[0].mxu0
    %v913 = vadd.f32 0.0, %v912
    %v914 = vpop.f32.mrb[0].mxu0
    %915 = vdwg.mxu0
    %v916 = vadd.f32 %v836, %v913
    %v917 = vld [vmem:[%s3 + $0xc] sm:$0x1]
    %v918 = vlaneseq
    %v919 = vshrl.u32 %v918, 7
    %v920 = vsub.s32 0, %v919
    %v921 = vrot.slane %v917, %v920
    %v922 = vadd.f32 %v916, %v921
    %vm923 = vcmp.gt.f32.partialorder %v922, 0.0
    %v924 = vmul.f32 %v922, 0.01
    %v925 = vsel %vm923, %v922, %v924
    %v926 = vsel %vm105, %v925, 0.0
    %927 = vadd.xlane.f32.xlu0 %v926
    %v928 = vpop.xlane.xlu0 %927
    %v929 = vmul.f32 %v928, %v109
    %v930 = vsub.f32 %v925, %v929
    %v931 = vmul.f32 %v930, %v930
    %v932 = vsel %vm105, %v931, 0.0
    %933 = vadd.xlane.f32.xlu0 %v932
    %v934 = vpop.xlane.xlu0 %933
    %v935 = vmul.f32 %v934, %v109
    %v936 = vadd.f32 %v935, 1e-05
    %v937 = vrsqrt.pop %v936
    %v938 = vmul.f32 %v930, %v937
    %v939 = vld [vmem:[%s3 + $0xd] sm:$0x1]
    %v940 = vlaneseq
    %v941 = vshrl.u32 %v940, 7
    %v942 = vsub.s32 0, %v941
    %v943 = vrot.slane %v939, %v942
    %v944 = vmul.f32 %v938, %v943
    %v945 = vld [vmem:[%s3 + $0xe] sm:$0x1]
    %v946 = vlaneseq
    %v947 = vshrl.u32 %v946, 7
    %v948 = vsub.s32 0, %v947
    %v949 = vrot.slane %v945, %v948
    %v950 = vadd.f32 %v944, %v949
    %v951 = vld [vmem:[%s2 + $0x100] sm:$0xff]
    %v952 = vld [vmem:[%s2 + $0x108] sm:$0xff]
    %v953 = vld [vmem:[%s2 + $0x110] sm:$0xff]
    %v954 = vld [vmem:[%s2 + $0x118] sm:$0xff]
    %v955 = vld [vmem:[%s2 + $0x120] sm:$0xff]
    %v956 = vld [vmem:[%s2 + $0x128] sm:$0xff]
    %v957 = vld [vmem:[%s2 + $0x130] sm:$0xff]
    %v958 = vld [vmem:[%s2 + $0x138] sm:$0xff]
    %v960 = vsel %vm105, %v950, 0
    %962 = vmatprep.subr.mxu0 0.0
    %963 = vmatpush1.msra.mxu0 %v955
    %964 = vmatprep.subr.mxu0 0.0
    %965 = vmatpush1.msra.mxu0 %v956
    %966 = vmatprep.subr.mxu0 0.0
    %967 = vmatpush1.msra.mxu0 %v957
    %968 = vmatprep.subr.mxu0 0.0
    %969 = vmatpush1.msra.mxu0 %v958
    %970 = vmatprep.subr.mxu0 0.0
    %971 = vmatpush1.msra.mxu0 0.0
    %972 = vmatprep.subr.mxu0 0.0
    %973 = vmatpush1.msra.mxu0 0.0
    %974 = vmatprep.subr.mxu0 0.0
    %975 = vmatpush1.msra.mxu0 0.0
    %976 = vmatprep.subr.mxu0 0.0
    %977 = vmatpush1.msra.mxu0 0.0
    %978 = vmatprep.subr.mxu0 0.0
    %979 = vmatpush1.msra.mxu0 0.0
    %980 = vmatprep.subr.mxu0 0.0
    %981 = vmatpush1.msra.mxu0 0.0
    %982 = vmatprep.subr.mxu0 0.0
    %983 = vmatpush1.msra.mxu0 0.0
    %984 = vmatprep.subr.mxu0 0.0
    %985 = vmatpush1.msra.mxu0 0.0
    %986 = vmatprep.subr.mxu0 0.0
    %987 = vmatpush1.msra.mxu0 0.0
    %988 = vmatprep.subr.mxu0 0.0
    %989 = vmatpush1.msra.mxu0 0.0
    %990 = vmatprep.subr.mxu0 0.0
    %991 = vmatpush1.msra.mxu0 0.0
    %992 = vmatprep.subr.mxu0 0.0
    %993 = vmatpush1.msra.mxu0 0.0
    %994 = vmatprep.subr.mxu0 0.0
    %995 = vmatpush1.msra.mxu0 0.0
    %996 = vmatprep.subr.mxu0 0.0
    %997 = vmatpush1.msra.mxu0 0.0
    %998 = vmatprep.subr.mxu0 0.0
    %999 = vmatpush1.msra.mxu0 0.0
    %1000 = vmatprep.subr.mxu0 0.0
    %1001 = vmatpush1.msra.mxu0 0.0
    %1002 = vmatprep.subr.mxu0 0.0
    %1003 = vmatpush1.msra.mxu0 0.0
    %1004 = vmatprep.subr.mxu0 0.0
    %1005 = vmatpush1.msra.mxu0 0.0
    %1006 = vmatprep.subr.mxu0 0.0
    %1007 = vmatpush1.msra.mxu0 0.0
    %1008 = vmatprep.subr.mxu0 0.0
    %1009 = vmatpush1.msra.mxu0 0.0
    %1010 = vmatprep.subr.mxu0 0.0
    %1011 = vmatpush1.msra.mxu0 0.0
    %1012 = vmatprep.subr.mxu0 0.0
    %1013 = vmatpush1.msra.mxu0 0.0
    %1014 = vmatprep.subr.mxu0 0.0
    %1015 = vmatpush1.msra.mxu0 0.0
    %1016 = vmatprep.subr.mxu0 0.0
    %1017 = vmatpush1.msra.mxu0 0.0
    %1018 = vmatprep.subr.mxu0 0.0
    %1019 = vmatpush1.msra.mxu0 0.0
    %1020 = vmatprep.subr.mxu0 0.0
    %1021 = vmatpush1.msra.mxu0 0.0
    %1022 = vmatprep.subr.mxu0 0.0
    %1023 = vmatpush1.msra.mxu0 0.0
    %1024 = vmatprep.subr.mxu0 0.0
    %1025 = vmatpush1.msra.mxu0 0.0
    %1026 = vmatprep.mubr.f32.mxu0 0.0
    %1027 = vmatmul.mubr.f32.gmra.mrb[0].mxu0 %v960
    %v1028 = vpop.f32.mrb[0].mxu0
    %v1029 = vadd.f32 0.0, %v1028
    %v1030 = vpop.f32.mrb[0].mxu0
    %1031 = vdwg.mxu0
    %1032 = vmatprep.subr.mxu0 0.0
    %1033 = vmatpush1.msra.mxu0 %v951
    %1034 = vmatprep.subr.mxu0 0.0
    %1035 = vmatpush1.msra.mxu0 %v952
    %1036 = vmatprep.subr.mxu0 0.0
    %1037 = vmatpush1.msra.mxu0 %v953
    %1038 = vmatprep.subr.mxu0 0.0
    %1039 = vmatpush1.msra.mxu0 %v954
    %1040 = vmatprep.subr.mxu0 0.0
    %1041 = vmatpush1.msra.mxu0 0.0
    %1042 = vmatprep.subr.mxu0 0.0
    %1043 = vmatpush1.msra.mxu0 0.0
    %1044 = vmatprep.subr.mxu0 0.0
    %1045 = vmatpush1.msra.mxu0 0.0
    %1046 = vmatprep.subr.mxu0 0.0
    %1047 = vmatpush1.msra.mxu0 0.0
    %1048 = vmatprep.subr.mxu0 0.0
    %1049 = vmatpush1.msra.mxu0 0.0
    %1050 = vmatprep.subr.mxu0 0.0
    %1051 = vmatpush1.msra.mxu0 0.0
    %1052 = vmatprep.subr.mxu0 0.0
    %1053 = vmatpush1.msra.mxu0 0.0
    %1054 = vmatprep.subr.mxu0 0.0
    %1055 = vmatpush1.msra.mxu0 0.0
    %1056 = vmatprep.subr.mxu0 0.0
    %1057 = vmatpush1.msra.mxu0 0.0
    %1058 = vmatprep.subr.mxu0 0.0
    %1059 = vmatpush1.msra.mxu0 0.0
    %1060 = vmatprep.subr.mxu0 0.0
    %1061 = vmatpush1.msra.mxu0 0.0
    %1062 = vmatprep.subr.mxu0 0.0
    %1063 = vmatpush1.msra.mxu0 0.0
    %1064 = vmatprep.subr.mxu0 0.0
    %1065 = vmatpush1.msra.mxu0 0.0
    %1066 = vmatprep.subr.mxu0 0.0
    %1067 = vmatpush1.msra.mxu0 0.0
    %1068 = vmatprep.subr.mxu0 0.0
    %1069 = vmatpush1.msra.mxu0 0.0
    %1070 = vmatprep.subr.mxu0 0.0
    %1071 = vmatpush1.msra.mxu0 0.0
    %1072 = vmatprep.subr.mxu0 0.0
    %1073 = vmatpush1.msra.mxu0 0.0
    %1074 = vmatprep.subr.mxu0 0.0
    %1075 = vmatpush1.msra.mxu0 0.0
    %1076 = vmatprep.subr.mxu0 0.0
    %1077 = vmatpush1.msra.mxu0 0.0
    %1078 = vmatprep.subr.mxu0 0.0
    %1079 = vmatpush1.msra.mxu0 0.0
    %1080 = vmatprep.subr.mxu0 0.0
    %1081 = vmatpush1.msra.mxu0 0.0
    %1082 = vmatprep.subr.mxu0 0.0
    %1083 = vmatpush1.msra.mxu0 0.0
    %1084 = vmatprep.subr.mxu0 0.0
    %1085 = vmatpush1.msra.mxu0 0.0
    %1086 = vmatprep.subr.mxu0 0.0
    %1087 = vmatpush1.msra.mxu0 0.0
    %1088 = vmatprep.subr.mxu0 0.0
    %1089 = vmatpush1.msra.mxu0 0.0
    %1090 = vmatprep.subr.mxu0 0.0
    %1091 = vmatpush1.msra.mxu0 0.0
    %1092 = vmatprep.subr.mxu0 0.0
    %1093 = vmatpush1.msra.mxu0 0.0
    %1094 = vmatprep.subr.mxu0 0.0
    %1095 = vmatpush1.msra.mxu0 0.0
    %1096 = vmatprep.mubr.f32.mxu0 0.0
    %1097 = vmatmul.mubr.f32.gmra.mrb[0].mxu0 %v844
    %v1098 = vpop.f32.mrb[0].mxu0
    %v1099 = vadd.f32 %v1029, %v1098
    %v1100 = vpop.f32.mrb[0].mxu0
    %1101 = vdwg.mxu0
    %v1102 = vld [vmem:[%s3 + $0xf] sm:$0x1]
    %v1103 = vlaneseq
    %v1104 = vshrl.u32 %v1103, 7
    %v1105 = vsub.s32 0, %v1104
    %v1106 = vrot.slane %v1102, %v1105
    %v1107 = vadd.f32 %v1099, %v1106
    %vm1108 = vcmp.gt.f32.partialorder %v1107, 0.0
    %v1109 = vmul.f32 %v1107, 0.01
    %v1110 = vsel %vm1108, %v1107, %v1109
    %v1111 = vsel %vm105, %v1110, 0.0
    %1112 = vadd.xlane.f32.xlu0 %v1111
    %v1113 = vpop.xlane.xlu0 %1112
    %v1114 = vmul.f32 %v1113, %v109
    %v1115 = vsub.f32 %v1110, %v1114
    %v1116 = vmul.f32 %v1115, %v1115
    %v1117 = vsel %vm105, %v1116, 0.0
    %1118 = vadd.xlane.f32.xlu0 %v1117
    %v1119 = vpop.xlane.xlu0 %1118
    %v1120 = vmul.f32 %v1119, %v109
    %v1121 = vadd.f32 %v1120, 1e-05
    %v1122 = vrsqrt.pop %v1121
    %v1123 = vmul.f32 %v1115, %v1122
    %v1124 = vld [vmem:[%s3 + $0x10] sm:$0x1]
    %v1125 = vlaneseq
    %v1126 = vshrl.u32 %v1125, 7
    %v1127 = vsub.s32 0, %v1126
    %v1128 = vrot.slane %v1124, %v1127
    %v1129 = vmul.f32 %v1123, %v1128
    %v1130 = vld [vmem:[%s3 + $0x11] sm:$0x1]
    %v1131 = vlaneseq
    %v1132 = vshrl.u32 %v1131, 7
    %v1133 = vsub.s32 0, %v1132
    %v1134 = vrot.slane %v1130, %v1133
    %v1135 = vadd.f32 %v1129, %v1134
    %v1136 = vld [vmem:[%s2 + $0x140] sm:$0xff]
    %v1137 = vld [vmem:[%s2 + $0x148] sm:$0xff]
    %v1138 = vld [vmem:[%s2 + $0x150] sm:$0xff]
    %v1139 = vld [vmem:[%s2 + $0x158] sm:$0xff]
    %v1140 = vld [vmem:[%s2 + $0x160] sm:$0xff]
    %v1141 = vld [vmem:[%s2 + $0x168] sm:$0xff]
    %v1142 = vld [vmem:[%s2 + $0x170] sm:$0xff]
    %v1143 = vld [vmem:[%s2 + $0x178] sm:$0xff]
    %v1145 = vsel %vm105, %v1135, 0
    %1147 = vmatprep.subr.mxu0 0.0
    %1148 = vmatpush1.msra.mxu0 %v1140
    %1149 = vmatprep.subr.mxu0 0.0
    %1150 = vmatpush1.msra.mxu0 %v1141
    %1151 = vmatprep.subr.mxu0 0.0
    %1152 = vmatpush1.msra.mxu0 %v1142
    %1153 = vmatprep.subr.mxu0 0.0
    %1154 = vmatpush1.msra.mxu0 %v1143
    %1155 = vmatprep.subr.mxu0 0.0
    %1156 = vmatpush1.msra.mxu0 0.0
    %1157 = vmatprep.subr.mxu0 0.0
    %1158 = vmatpush1.msra.mxu0 0.0
    %1159 = vmatprep.subr.mxu0 0.0
    %1160 = vmatpush1.msra.mxu0 0.0
    %1161 = vmatprep.subr.mxu0 0.0
    %1162 = vmatpush1.msra.mxu0 0.0
    %1163 = vmatprep.subr.mxu0 0.0
    %1164 = vmatpush1.msra.mxu0 0.0
    %1165 = vmatprep.subr.mxu0 0.0
    %1166 = vmatpush1.msra.mxu0 0.0
    %1167 = vmatprep.subr.mxu0 0.0
    %1168 = vmatpush1.msra.mxu0 0.0
    %1169 = vmatprep.subr.mxu0 0.0
    %1170 = vmatpush1.msra.mxu0 0.0
    %1171 = vmatprep.subr.mxu0 0.0
    %1172 = vmatpush1.msra.mxu0 0.0
    %1173 = vmatprep.subr.mxu0 0.0
    %1174 = vmatpush1.msra.mxu0 0.0
    %1175 = vmatprep.subr.mxu0 0.0
    %1176 = vmatpush1.msra.mxu0 0.0
    %1177 = vmatprep.subr.mxu0 0.0
    %1178 = vmatpush1.msra.mxu0 0.0
    %1179 = vmatprep.subr.mxu0 0.0
    %1180 = vmatpush1.msra.mxu0 0.0
    %1181 = vmatprep.subr.mxu0 0.0
    %1182 = vmatpush1.msra.mxu0 0.0
    %1183 = vmatprep.subr.mxu0 0.0
    %1184 = vmatpush1.msra.mxu0 0.0
    %1185 = vmatprep.subr.mxu0 0.0
    %1186 = vmatpush1.msra.mxu0 0.0
    %1187 = vmatprep.subr.mxu0 0.0
    %1188 = vmatpush1.msra.mxu0 0.0
    %1189 = vmatprep.subr.mxu0 0.0
    %1190 = vmatpush1.msra.mxu0 0.0
    %1191 = vmatprep.subr.mxu0 0.0
    %1192 = vmatpush1.msra.mxu0 0.0
    %1193 = vmatprep.subr.mxu0 0.0
    %1194 = vmatpush1.msra.mxu0 0.0
    %1195 = vmatprep.subr.mxu0 0.0
    %1196 = vmatpush1.msra.mxu0 0.0
    %1197 = vmatprep.subr.mxu0 0.0
    %1198 = vmatpush1.msra.mxu0 0.0
    %1199 = vmatprep.subr.mxu0 0.0
    %1200 = vmatpush1.msra.mxu0 0.0
    %1201 = vmatprep.subr.mxu0 0.0
    %1202 = vmatpush1.msra.mxu0 0.0
    %1203 = vmatprep.subr.mxu0 0.0
    %1204 = vmatpush1.msra.mxu0 0.0
    %1205 = vmatprep.subr.mxu0 0.0
    %1206 = vmatpush1.msra.mxu0 0.0
    %1207 = vmatprep.subr.mxu0 0.0
    %1208 = vmatpush1.msra.mxu0 0.0
    %1209 = vmatprep.subr.mxu0 0.0
    %1210 = vmatpush1.msra.mxu0 0.0
    %1211 = vmatprep.mubr.f32.mxu0 0.0
    %1212 = vmatmul.mubr.f32.gmra.mrb[0].mxu0 %v1145
    %v1213 = vpop.f32.mrb[0].mxu0
    %v1214 = vadd.f32 0.0, %v1213
    %v1215 = vpop.f32.mrb[0].mxu0
    %1216 = vdwg.mxu0
    %1217 = vmatprep.subr.mxu0 0.0
    %1218 = vmatpush1.msra.mxu0 %v1136
    %1219 = vmatprep.subr.mxu0 0.0
    %1220 = vmatpush1.msra.mxu0 %v1137
    %1221 = vmatprep.subr.mxu0 0.0
    %1222 = vmatpush1.msra.mxu0 %v1138
    %1223 = vmatprep.subr.mxu0 0.0
    %1224 = vmatpush1.msra.mxu0 %v1139
    %1225 = vmatprep.subr.mxu0 0.0
    %1226 = vmatpush1.msra.mxu0 0.0
    %1227 = vmatprep.subr.mxu0 0.0
    %1228 = vmatpush1.msra.mxu0 0.0
    %1229 = vmatprep.subr.mxu0 0.0
    %1230 = vmatpush1.msra.mxu0 0.0
    %1231 = vmatprep.subr.mxu0 0.0
    %1232 = vmatpush1.msra.mxu0 0.0
    %1233 = vmatprep.subr.mxu0 0.0
    %1234 = vmatpush1.msra.mxu0 0.0
    %1235 = vmatprep.subr.mxu0 0.0
    %1236 = vmatpush1.msra.mxu0 0.0
    %1237 = vmatprep.subr.mxu0 0.0
    %1238 = vmatpush1.msra.mxu0 0.0
    %1239 = vmatprep.subr.mxu0 0.0
    %1240 = vmatpush1.msra.mxu0 0.0
    %1241 = vmatprep.subr.mxu0 0.0
    %1242 = vmatpush1.msra.mxu0 0.0
    %1243 = vmatprep.subr.mxu0 0.0
    %1244 = vmatpush1.msra.mxu0 0.0
    %1245 = vmatprep.subr.mxu0 0.0
    %1246 = vmatpush1.msra.mxu0 0.0
    %1247 = vmatprep.subr.mxu0 0.0
    %1248 = vmatpush1.msra.mxu0 0.0
    %1249 = vmatprep.subr.mxu0 0.0
    %1250 = vmatpush1.msra.mxu0 0.0
    %1251 = vmatprep.subr.mxu0 0.0
    %1252 = vmatpush1.msra.mxu0 0.0
    %1253 = vmatprep.subr.mxu0 0.0
    %1254 = vmatpush1.msra.mxu0 0.0
    %1255 = vmatprep.subr.mxu0 0.0
    %1256 = vmatpush1.msra.mxu0 0.0
    %1257 = vmatprep.subr.mxu0 0.0
    %1258 = vmatpush1.msra.mxu0 0.0
    %1259 = vmatprep.subr.mxu0 0.0
    %1260 = vmatpush1.msra.mxu0 0.0
    %1261 = vmatprep.subr.mxu0 0.0
    %1262 = vmatpush1.msra.mxu0 0.0
    %1263 = vmatprep.subr.mxu0 0.0
    %1264 = vmatpush1.msra.mxu0 0.0
    %1265 = vmatprep.subr.mxu0 0.0
    %1266 = vmatpush1.msra.mxu0 0.0
    %1267 = vmatprep.subr.mxu0 0.0
    %1268 = vmatpush1.msra.mxu0 0.0
    %1269 = vmatprep.subr.mxu0 0.0
    %1270 = vmatpush1.msra.mxu0 0.0
    %1271 = vmatprep.subr.mxu0 0.0
    %1272 = vmatpush1.msra.mxu0 0.0
    %1273 = vmatprep.subr.mxu0 0.0
    %1274 = vmatpush1.msra.mxu0 0.0
    %1275 = vmatprep.subr.mxu0 0.0
    %1276 = vmatpush1.msra.mxu0 0.0
    %1277 = vmatprep.subr.mxu0 0.0
    %1278 = vmatpush1.msra.mxu0 0.0
    %1279 = vmatprep.subr.mxu0 0.0
    %1280 = vmatpush1.msra.mxu0 0.0
    %1281 = vmatprep.mubr.f32.mxu0 0.0
    %1282 = vmatmul.mubr.f32.gmra.mrb[0].mxu0 %v960
    %v1283 = vpop.f32.mrb[0].mxu0
    %v1284 = vadd.f32 %v1214, %v1283
    %v1285 = vpop.f32.mrb[0].mxu0
    %1286 = vdwg.mxu0
    %v1287 = vld [vmem:[%s3 + $0x12] sm:$0x1]
    %v1288 = vlaneseq
    %v1289 = vshrl.u32 %v1288, 7
    %v1290 = vsub.s32 0, %v1289
    %v1291 = vrot.slane %v1287, %v1290
    %v1292 = vadd.f32 %v1284, %v1291
    %vm1293 = vcmp.gt.f32.partialorder %v1292, 0.0
    %v1294 = vmul.f32 %v1292, 0.01
    %v1295 = vsel %vm1293, %v1292, %v1294
    %v1296 = vsel %vm105, %v1295, 0.0
    %1297 = vadd.xlane.f32.xlu0 %v1296
    %v1298 = vpop.xlane.xlu0 %1297
    %v1299 = vmul.f32 %v1298, %v109
    %v1300 = vsub.f32 %v1295, %v1299
    %v1301 = vmul.f32 %v1300, %v1300
    %v1302 = vsel %vm105, %v1301, 0.0
    %1303 = vadd.xlane.f32.xlu0 %v1302
    %v1304 = vpop.xlane.xlu0 %1303
    %v1305 = vmul.f32 %v1304, %v109
    %v1306 = vadd.f32 %v1305, 1e-05
    %v1307 = vrsqrt.pop %v1306
    %v1308 = vmul.f32 %v1300, %v1307
    %v1309 = vld [vmem:[%s3 + $0x13] sm:$0x1]
    %v1310 = vlaneseq
    %v1311 = vshrl.u32 %v1310, 7
    %v1312 = vsub.s32 0, %v1311
    %v1313 = vrot.slane %v1309, %v1312
    %v1314 = vmul.f32 %v1308, %v1313
    %v1315 = vld [vmem:[%s3 + $0x14] sm:$0x1]
    %v1316 = vlaneseq
    %v1317 = vshrl.u32 %v1316, 7
    %v1318 = vsub.s32 0, %v1317
    %v1319 = vrot.slane %v1315, %v1318
    %v1320 = vadd.f32 %v1314, %v1319
    %v1321 = vld [vmem:[%s2 + $0x180] sm:$0xff]
    %v1322 = vld [vmem:[%s2 + $0x188] sm:$0xff]
    %v1323 = vld [vmem:[%s2 + $0x190] sm:$0xff]
    %v1324 = vld [vmem:[%s2 + $0x198] sm:$0xff]
    %v1325 = vld [vmem:[%s2 + $0x1a0] sm:$0xff]
    %v1326 = vld [vmem:[%s2 + $0x1a8] sm:$0xff]
    %v1327 = vld [vmem:[%s2 + $0x1b0] sm:$0xff]
    %v1328 = vld [vmem:[%s2 + $0x1b8] sm:$0xff]
    %v1330 = vsel %vm105, %v1320, 0
    %1332 = vmatprep.subr.mxu0 0.0
    %1333 = vmatpush1.msra.mxu0 %v1325
    %1334 = vmatprep.subr.mxu0 0.0
    %1335 = vmatpush1.msra.mxu0 %v1326
    %1336 = vmatprep.subr.mxu0 0.0
    %1337 = vmatpush1.msra.mxu0 %v1327
    %1338 = vmatprep.subr.mxu0 0.0
    %1339 = vmatpush1.msra.mxu0 %v1328
    %1340 = vmatprep.subr.mxu0 0.0
    %1341 = vmatpush1.msra.mxu0 0.0
    %1342 = vmatprep.subr.mxu0 0.0
    %1343 = vmatpush1.msra.mxu0 0.0
    %1344 = vmatprep.subr.mxu0 0.0
    %1345 = vmatpush1.msra.mxu0 0.0
    %1346 = vmatprep.subr.mxu0 0.0
    %1347 = vmatpush1.msra.mxu0 0.0
    %1348 = vmatprep.subr.mxu0 0.0
    %1349 = vmatpush1.msra.mxu0 0.0
    %1350 = vmatprep.subr.mxu0 0.0
    %1351 = vmatpush1.msra.mxu0 0.0
    %1352 = vmatprep.subr.mxu0 0.0
    %1353 = vmatpush1.msra.mxu0 0.0
    %1354 = vmatprep.subr.mxu0 0.0
    %1355 = vmatpush1.msra.mxu0 0.0
    %1356 = vmatprep.subr.mxu0 0.0
    %1357 = vmatpush1.msra.mxu0 0.0
    %1358 = vmatprep.subr.mxu0 0.0
    %1359 = vmatpush1.msra.mxu0 0.0
    %1360 = vmatprep.subr.mxu0 0.0
    %1361 = vmatpush1.msra.mxu0 0.0
    %1362 = vmatprep.subr.mxu0 0.0
    %1363 = vmatpush1.msra.mxu0 0.0
    %1364 = vmatprep.subr.mxu0 0.0
    %1365 = vmatpush1.msra.mxu0 0.0
    %1366 = vmatprep.subr.mxu0 0.0
    %1367 = vmatpush1.msra.mxu0 0.0
    %1368 = vmatprep.subr.mxu0 0.0
    %1369 = vmatpush1.msra.mxu0 0.0
    %1370 = vmatprep.subr.mxu0 0.0
    %1371 = vmatpush1.msra.mxu0 0.0
    %1372 = vmatprep.subr.mxu0 0.0
    %1373 = vmatpush1.msra.mxu0 0.0
    %1374 = vmatprep.subr.mxu0 0.0
    %1375 = vmatpush1.msra.mxu0 0.0
    %1376 = vmatprep.subr.mxu0 0.0
    %1377 = vmatpush1.msra.mxu0 0.0
    %1378 = vmatprep.subr.mxu0 0.0
    %1379 = vmatpush1.msra.mxu0 0.0
    %1380 = vmatprep.subr.mxu0 0.0
    %1381 = vmatpush1.msra.mxu0 0.0
    %1382 = vmatprep.subr.mxu0 0.0
    %1383 = vmatpush1.msra.mxu0 0.0
    %1384 = vmatprep.subr.mxu0 0.0
    %1385 = vmatpush1.msra.mxu0 0.0
    %1386 = vmatprep.subr.mxu0 0.0
    %1387 = vmatpush1.msra.mxu0 0.0
    %1388 = vmatprep.subr.mxu0 0.0
    %1389 = vmatpush1.msra.mxu0 0.0
    %1390 = vmatprep.subr.mxu0 0.0
    %1391 = vmatpush1.msra.mxu0 0.0
    %1392 = vmatprep.subr.mxu0 0.0
    %1393 = vmatpush1.msra.mxu0 0.0
    %1394 = vmatprep.subr.mxu0 0.0
    %1395 = vmatpush1.msra.mxu0 0.0
    %1396 = vmatprep.mubr.f32.mxu0 0.0
    %1397 = vmatmul.mubr.f32.gmra.mrb[0].mxu0 %v1330
    %v1398 = vpop.f32.mrb[0].mxu0
    %v1399 = vadd.f32 0.0, %v1398
    %v1400 = vpop.f32.mrb[0].mxu0
    %1401 = vdwg.mxu0
    %1402 = vmatprep.subr.mxu0 0.0
    %1403 = vmatpush1.msra.mxu0 %v1321
    %1404 = vmatprep.subr.mxu0 0.0
    %1405 = vmatpush1.msra.mxu0 %v1322
    %1406 = vmatprep.subr.mxu0 0.0
    %1407 = vmatpush1.msra.mxu0 %v1323
    %1408 = vmatprep.subr.mxu0 0.0
    %1409 = vmatpush1.msra.mxu0 %v1324
    %1410 = vmatprep.subr.mxu0 0.0
    %1411 = vmatpush1.msra.mxu0 0.0
    %1412 = vmatprep.subr.mxu0 0.0
    %1413 = vmatpush1.msra.mxu0 0.0
    %1414 = vmatprep.subr.mxu0 0.0
    %1415 = vmatpush1.msra.mxu0 0.0
    %1416 = vmatprep.subr.mxu0 0.0
    %1417 = vmatpush1.msra.mxu0 0.0
    %1418 = vmatprep.subr.mxu0 0.0
    %1419 = vmatpush1.msra.mxu0 0.0
    %1420 = vmatprep.subr.mxu0 0.0
    %1421 = vmatpush1.msra.mxu0 0.0
    %1422 = vmatprep.subr.mxu0 0.0
    %1423 = vmatpush1.msra.mxu0 0.0
    %1424 = vmatprep.subr.mxu0 0.0
    %1425 = vmatpush1.msra.mxu0 0.0
    %1426 = vmatprep.subr.mxu0 0.0
    %1427 = vmatpush1.msra.mxu0 0.0
    %1428 = vmatprep.subr.mxu0 0.0
    %1429 = vmatpush1.msra.mxu0 0.0
    %1430 = vmatprep.subr.mxu0 0.0
    %1431 = vmatpush1.msra.mxu0 0.0
    %1432 = vmatprep.subr.mxu0 0.0
    %1433 = vmatpush1.msra.mxu0 0.0
    %1434 = vmatprep.subr.mxu0 0.0
    %1435 = vmatpush1.msra.mxu0 0.0
    %1436 = vmatprep.subr.mxu0 0.0
    %1437 = vmatpush1.msra.mxu0 0.0
    %1438 = vmatprep.subr.mxu0 0.0
    %1439 = vmatpush1.msra.mxu0 0.0
    %1440 = vmatprep.subr.mxu0 0.0
    %1441 = vmatpush1.msra.mxu0 0.0
    %1442 = vmatprep.subr.mxu0 0.0
    %1443 = vmatpush1.msra.mxu0 0.0
    %1444 = vmatprep.subr.mxu0 0.0
    %1445 = vmatpush1.msra.mxu0 0.0
    %1446 = vmatprep.subr.mxu0 0.0
    %1447 = vmatpush1.msra.mxu0 0.0
    %1448 = vmatprep.subr.mxu0 0.0
    %1449 = vmatpush1.msra.mxu0 0.0
    %1450 = vmatprep.subr.mxu0 0.0
    %1451 = vmatpush1.msra.mxu0 0.0
    %1452 = vmatprep.subr.mxu0 0.0
    %1453 = vmatpush1.msra.mxu0 0.0
    %1454 = vmatprep.subr.mxu0 0.0
    %1455 = vmatpush1.msra.mxu0 0.0
    %1456 = vmatprep.subr.mxu0 0.0
    %1457 = vmatpush1.msra.mxu0 0.0
    %1458 = vmatprep.subr.mxu0 0.0
    %1459 = vmatpush1.msra.mxu0 0.0
    %1460 = vmatprep.subr.mxu0 0.0
    %1461 = vmatpush1.msra.mxu0 0.0
    %1462 = vmatprep.subr.mxu0 0.0
    %1463 = vmatpush1.msra.mxu0 0.0
    %1464 = vmatprep.subr.mxu0 0.0
    %1465 = vmatpush1.msra.mxu0 0.0
    %1466 = vmatprep.mubr.f32.mxu0 0.0
    %1467 = vmatmul.mubr.f32.gmra.mrb[0].mxu0 %v1145
    %v1468 = vpop.f32.mrb[0].mxu0
    %v1469 = vadd.f32 %v1399, %v1468
    %v1470 = vpop.f32.mrb[0].mxu0
    %1471 = vdwg.mxu0
    %v1472 = vld [vmem:[%s3 + $0x15] sm:$0x1]
    %v1473 = vlaneseq
    %v1474 = vshrl.u32 %v1473, 7
    %v1475 = vsub.s32 0, %v1474
    %v1476 = vrot.slane %v1472, %v1475
    %v1477 = vadd.f32 %v1469, %v1476
    %vm1478 = vcmp.gt.f32.partialorder %v1477, 0.0
    %v1479 = vmul.f32 %v1477, 0.01
    %v1480 = vsel %vm1478, %v1477, %v1479
    %v1481 = vsel %vm105, %v1480, 0.0
    %1482 = vadd.xlane.f32.xlu0 %v1481
    %v1483 = vpop.xlane.xlu0 %1482
    %v1484 = vmul.f32 %v1483, %v109
    %v1485 = vsub.f32 %v1480, %v1484
    %v1486 = vmul.f32 %v1485, %v1485
    %v1487 = vsel %vm105, %v1486, 0.0
    %1488 = vadd.xlane.f32.xlu0 %v1487
    %v1489 = vpop.xlane.xlu0 %1488
    %v1490 = vmul.f32 %v1489, %v109
    %v1491 = vadd.f32 %v1490, 1e-05
    %v1492 = vrsqrt.pop %v1491
    %v1493 = vmul.f32 %v1485, %v1492
    %v1494 = vld [vmem:[%s3 + $0x16] sm:$0x1]
    %v1495 = vlaneseq
    %v1496 = vshrl.u32 %v1495, 7
    %v1497 = vsub.s32 0, %v1496
    %v1498 = vrot.slane %v1494, %v1497
    %v1499 = vmul.f32 %v1493, %v1498
    %v1500 = vld [vmem:[%s3 + $0x17] sm:$0x1]
    %v1501 = vlaneseq
    %v1502 = vshrl.u32 %v1501, 7
    %v1503 = vsub.s32 0, %v1502
    %v1504 = vrot.slane %v1500, %v1503
    %v1505 = vadd.f32 %v1499, %v1504
    %1506 = vst.msk [vmem:[#allocation2] sm:$0xff] %vm105, %v1505
    // Predicated region
    $region18: #{tpu_custom_call.1} parent=1 // pred_check
      _
    $region19: #{tpu_custom_call.1} parent=1 // pred_check_branch
      %1508 = sbr.rel (0) target = $region21
    $region20: #{tpu_custom_call.1} parent=1 // pred_region
      %s1510 = ssub.s32 128, 128
      %1511 = vsyncadd [#allocation3], %s1510
      %s1513 = sshll.u32 [#allocation2], 4
      %s1514 = int_to_ptr.vmem [resolvable:$true] %s1513
      %1516 = dma.vmem_to_hbm [thread:$0]  %s1514, 128, %s4, [#allocation3]
    $region21: #{tpu_custom_call.1} parent=1 // pred_fallthru
      _
    // Predicated region
    $region22: #{tpu_custom_call.1} parent=1 // pred_check
      _
    $region23: #{tpu_custom_call.1} parent=1 // pred_check_branch
      %1518 = sbr.rel (0) target = $region25
    $region24: #{tpu_custom_call.1} parent=1 // pred_region
      %1519 = dma.done [#allocation3], 128
    $region25: #{tpu_custom_call.1} parent=1 // pred_fallthru
      _
    %1520 = vsyncpa [#allocation3], 1

</llo_original>
